<compile_context>
chip_gen: v7x
topology: tpu7x:2x2x1
jax: 0.10.0
libtpu: 0.0.40
codegen_flags: <defaults>
</compile_context>

<pallas_src>
import math

import numpy as np
import jax
import jax.numpy as jnp
from jax import lax
from jax.experimental import pallas as pl
from jax.experimental.pallas import tpu as pltpu


def _ru8(n):
    return ((n + 7) // 8) * 8


def _ru128(n):
    return ((n + 127) // 128) * 128


# ------------------------------ Pallas kernel ------------------------------- #

def _make_fused_kernel(n_blocks, cout_pads, K, pad, B, W):
    """Fused forward: [Conv1d('same') -> ReLU -> *scale -> +shift] x n_blocks -> Conv1d."""
    Wi = W - 2 * pad                     # conv-output (interior) width

    def kernel(*refs):
        x_ref, obs_t_ref, mask_ref, fw_ref, fb_ref = refs[:5]
        conv_refs = refs[5:-1]           # [w0, b0, w1, b1, ..., w_final, b_final]
        out_ref = refs[-1]

        # FiLM scale/shift for every block and batch element: ONE MXU matmul.
        film = jnp.dot(fw_ref[...], obs_t_ref[...],
                       preferred_element_type=jnp.float32) + fb_ref[...]   # (2*sum_cp, B)
        # Validity / batch-membership mask restricted to interior (conv-output) cols.
        mask_i = mask_ref[...][:, pad:pad + Wi]                             # (B, Wi)

        def conv_same(h, w_ref, b_ref):
            # 'same' Conv1d as K accumulated MXU matmuls on lane-shifted slices
            # (no K-way im2col concatenate). Output column j <-> input column j + pad.
            acc = b_ref[...]                                   # (Cout_p, 1), broadcasts
            for k in range(K):
                acc = acc + jnp.dot(w_ref[k], h[:, k:k + Wi],
                                    preferred_element_type=jnp.float32)
            return acc                                         # (Cout_p, Wi)

        def reanchor(y):
            # Shift the conv output back to the fixed column coordinates so the
            # layout is identical for every layer (no drift).
            if pad == 0:
                return y
            z = jnp.zeros((y.shape[0], pad), jnp.float32)
            return jnp.concatenate([z, y, z], axis=1)          # (Cout_p, W)

        h = x_ref[...]                                         # (Cin_p, W)
        row = 0
        for l in range(n_blocks):
            cp = cout_pads[l]
            conv = conv_same(h, conv_refs[2 * l], conv_refs[2 * l + 1])
            # Per-batch FiLM broadcast on the VPU; scale/shift are zero on padding /
            # tail columns, which restores the zero-padding invariant for the next conv.
            scales = None
            shifts = None
            for b in range(B):
                m = mask_i[b:b + 1, :]                         # (1, Wi)
                s = film[row:row + cp, b:b + 1] * m
                t = film[row + cp:row + 2 * cp, b:b + 1] * m
                scales = s if scales is None else scales + s
                shifts = t if shifts is None else shifts + t
            h = reanchor(jnp.maximum(conv, 0.0) * scales + shifts)
            row += 2 * cp

        # Final conv (no activation / conditioning). Invalid columns hold garbage
        # but are never read back (the wrapper slices only valid columns).
        out_ref[...] = reanchor(conv_same(h, conv_refs[-2], conv_refs[-1]))

    return kernel


# --------------------------------- Module ----------------------------------- #

class SimpleConv1dSequencePallas:
    """Pallas port of robomimic SimpleConv1dSequence (forward only)."""

    def __init__(self, input_dim, output_dim, horizon, layer_dims,
                 kernel_size=5, obs_dim=128, key=None):
        assert len(layer_dims) >= 1, "need at least one FiLM block"
        # pad = K // 2 only reproduces PyTorch 'same' length for odd K.
        assert kernel_size % 2 == 1, "odd kernel_size required for 'same' padding"
        if key is None:
            key = jax.random.PRNGKey(0)
        self.kernel_size = kernel_size
        self.horizon = horizon
        self.output_dim = output_dim

        def uni(k, shape, bound):
            return jax.random.uniform(k, shape, jnp.float32, -bound, bound)

        # ---- raw parameters (PyTorch layout), used by the pure-JAX reference ----
        self.blocks = []
        prev = input_dim
        for dim in layer_dims:
            key, kcw, kcb, ksw, ksb, ktw, ktb = jax.random.split(key, 7)
            bc = 1.0 / math.sqrt(prev * kernel_size)   # PyTorch fan_in bound
            bl = 1.0 / math.sqrt(obs_dim)
            self.blocks.append(dict(
                cw=uni(kcw, (dim, prev, kernel_size), bc),
                cb=uni(kcb, (dim,), bc),
                sw=uni(ksw, (dim, obs_dim), bl),
                sb=uni(ksb, (dim,), bl),
                tw=uni(ktw, (dim, obs_dim), bl),
                tb=uni(ktb, (dim,), bl),
            ))
            prev = dim
        key, kfw, kfb = jax.random.split(key, 3)
        bf = 1.0 / math.sqrt(prev * kernel_size)
        self.final_w = uni(kfw, (output_dim, prev, kernel_size), bf)
        self.final_b = uni(kfb, (output_dim,), bf)

        # ---- kernel-layout parameters, packed ONCE (not per forward) ----
        K = kernel_size
        packed = []
        film_w_blocks, film_b_blocks, cout_pads = [], [], []
        prev = input_dim
        for blk in self.blocks:
            dim = blk["cw"].shape[0]
            prev_p, dim_p = _ru8(prev), _ru8(dim)
            cw_p = jnp.pad(blk["cw"], ((0, dim_p - dim), (0, prev_p - prev), (0, 0)))
            packed.append(jnp.transpose(cw_p, (2, 0, 1)))         # (K, Cout_p, Cin_p)
            packed.append(jnp.pad(blk["cb"], (0, dim_p - dim)).reshape(dim_p, 1))
            sw_p = jnp.pad(blk["sw"], ((0, dim_p - dim), (0, 0)))
            tw_p = jnp.pad(blk["tw"], ((0, dim_p - dim), (0, 0)))
            sb_p = jnp.pad(blk["sb"], (0, dim_p - dim))
            tb_p = jnp.pad(blk["tb"], (0, dim_p - dim))
            film_w_blocks.append(jnp.concatenate([sw_p, tw_p], axis=0))
            film_b_blocks.append(jnp.concatenate([sb_p, tb_p], axis=0))
            cout_pads.append(dim_p)
            prev = dim
        prev_p = _ru8(prev)
        out_p = _ru8(output_dim)                                   # 8-padded output rows
        fw_p = jnp.pad(self.final_w,
                       ((0, out_p - output_dim), (0, prev_p - prev), (0, 0)))
        packed.append(jnp.transpose(fw_p, (2, 0, 1)))              # (K, Cout_p, Cin_p)
        packed.append(jnp.pad(self.final_b, (0, out_p - output_dim)).reshape(out_p, 1))

        self._packed_convs = packed
        self._film_w = jnp.concatenate(film_w_blocks, axis=0)      # (2*sum_cp, obs_dim)
        self._film_b = jnp.concatenate(film_b_blocks, axis=0).reshape(-1, 1)
        self._cout_pads = tuple(cout_pads)
        self._cin_p0 = _ru8(input_dim)
        self._out_p = out_p

        self._mask_cache = {}
        # One jit for the whole forward: relayout + pallas_call + un-layout.
        self._fwd = jax.jit(self._forward_impl)

    # --------------------------- cached column mask -------------------------- #

    def _column_mask(self, B, T):
        key = (B, T)
        if key not in self._mask_cache:
            pad = self.kernel_size // 2
            Tp = T + 2 * pad
            W = _ru128(B * Tp)
            m = np.zeros((B, W), np.float32)
            for b in range(B):
                m[b, b * Tp + pad: b * Tp + pad + T] = 1.0
            self._mask_cache[key] = jnp.asarray(m)
        return self._mask_cache[key]

    # ------------------------------- forward -------------------------------- #

    def _forward_impl(self, x, obs_features):
        B, Cin, T = x.shape
        K = self.kernel_size
        pad = K // 2
        Tp = T + 2 * pad
        W = _ru128(B * Tp)                 # lane-dense slab width
        cin_p = self._cin_p0

        # (B, Cin, T) -> zero-padded lane-dense slab (Cin_p, W); batch b / time t at
        # column b*Tp + pad + t (the zero columns are the conv 'same' padding).
        xp = jnp.pad(x, ((0, 0), (0, cin_p - Cin), (pad, pad)))    # (B, Cin_p, Tp)
        slab = jnp.transpose(xp, (1, 0, 2)).reshape(cin_p, B * Tp)
        slab = jnp.pad(slab, ((0, 0), (0, W - B * Tp)))

        mask = self._column_mask(B, T)                             # (B, W) one-hot

        kernel = _make_fused_kernel(len(self._cout_pads), self._cout_pads,
                                    K, pad, B, W)
        vmem = pl.BlockSpec(memory_space=pltpu.MemorySpace.VMEM)
        n_in = 5 + len(self._packed_convs)

        out2d = pl.pallas_call(
            kernel,
            out_shape=jax.ShapeDtypeStruct((self._out_p, W), jnp.float32),
            in_specs=[vmem] * n_in,
            out_specs=vmem,
        )(slab, obs_features.T, mask, self._film_w, self._film_b,
          *self._packed_convs)

        # (Cout_p, W) -> (B, Cout, T): keep only valid rows / columns.
        out = out2d[:, :B * Tp].reshape(self._out_p, B, Tp)
        out = out[:self.output_dim, :, pad:pad + T]
        return jnp.transpose(out, (1, 0, 2))

    def __call__(self, x, obs_features):
        return self._fwd(x, obs_features)

    # Pure-JAX reference (mirrors the PyTorch forward) for correctness check.
    def reference(self, x, obs_features):
        pad = self.kernel_size // 2

        def conv(h, w, b):
            out = lax.conv_general_dilated(
                h, w, window_strides=(1,), padding=[(pad, pad)],
                dimension_numbers=("NCH", "OIH", "NCH"))
            return out + b[None, :, None]

        h = x
        for blk in self.blocks:
            h = jnp.maximum(conv(h, blk["cw"], blk["cb"]), 0.0)
            scale = obs_features @ blk["sw"].T + blk["sb"]
            shift = obs_features @ blk["tw"].T + blk["tb"]
            h = h * scale[:, :, None] + shift[:, :, None]
        return conv(h, self.final_w, self.final_b)


# ----------------------------------- main ------------------------------------ #

if __name__ == "__main__":
    B, input_dim, output_dim, horizon, obs_dim = 2, 4, 4, 16, 32
    layer_dims = (32, 32)
    kernel_size = 5

    key = jax.random.PRNGKey(0)
    k_params, k_x, k_obs = jax.random.split(key, 3)

    model = SimpleConv1dSequencePallas(input_dim, output_dim, horizon,
                                       layer_dims, kernel_size=kernel_size,
                                       obs_dim=obs_dim, key=k_params)

    x = jax.random.normal(k_x, (B, input_dim, horizon), jnp.float32)
    obs = jax.random.normal(k_obs, (B, obs_dim), jnp.float32)

    out = jax.block_until_ready(model(x, obs))
    assert out.shape == (B, output_dim, horizon), out.shape

    ref = jax.block_until_ready(model.reference(x, obs))
    max_err = float(jnp.max(jnp.abs(out - ref)))
    assert max_err < 1e-3, f"mismatch vs reference: {max_err}"

    # Edge-sensitive check: ramp input exercises the 'same'-padding boundaries.
    x2 = jnp.arange(B * input_dim * horizon, dtype=jnp.float32).reshape(
        B, input_dim, horizon) / float(input_dim * horizon)
    obs2 = jnp.linspace(-1.0, 1.0, B * obs_dim, dtype=jnp.float32).reshape(B, obs_dim)
    out2 = jax.block_until_ready(model(x2, obs2))
    ref2 = jax.block_until_ready(model.reference(x2, obs2))
    max_err2 = float(jnp.max(jnp.abs(out2 - ref2)))
    assert max_err2 < 1e-3, f"mismatch vs reference (ramp): {max_err2}"

    print("KERNEL_OK")
</pallas_src>

<mosaic_0001>
module attributes {stable_mosaic.version = 11 : i64} {
  func.func @kernel(%arg0: memref<8x128xf32, #tpu.memory_space<vmem>>, %arg1: memref<32x2xf32, #tpu.memory_space<vmem>>, %arg2: memref<2x128xf32, #tpu.memory_space<vmem>>, %arg3: memref<128x32xf32, #tpu.memory_space<vmem>>, %arg4: memref<128x1xf32, #tpu.memory_space<vmem>>, %arg5: memref<5x32x8xf32, #tpu.memory_space<vmem>>, %arg6: memref<32x1xf32, #tpu.memory_space<vmem>>, %arg7: memref<5x32x32xf32, #tpu.memory_space<vmem>>, %arg8: memref<32x1xf32, #tpu.memory_space<vmem>>, %arg9: memref<5x8x32xf32, #tpu.memory_space<vmem>>, %arg10: memref<8x1xf32, #tpu.memory_space<vmem>>, %arg11: memref<8x128xf32, #tpu.memory_space<vmem>>) attributes {dimension_semantics = [], scalar_prefetch = 0 : i64, scratch_operands = 0 : i64, tpu.core_type = #tpu.core_type<tc>} {
    %c0 = arith.constant 0 : index
    %c0_0 = arith.constant 0 : index
    %0 = vector.load %arg3[%c0, %c0_0] : memref<128x32xf32, #tpu.memory_space<vmem>>, vector<128x32xf32>
    %c0_1 = arith.constant 0 : index
    %c0_2 = arith.constant 0 : index
    %1 = vector.load %arg1[%c0_1, %c0_2] : memref<32x2xf32, #tpu.memory_space<vmem>>, vector<32x2xf32>
    %cst = arith.constant dense<0.000000e+00> : vector<128x2xf32>
    %2 = tpu.matmul %0, %1, %cst {dimension_numbers = #tpu.dot_dimension_numbers<[1], [0], [0], [1], [0, 0, 1, 1], [], []>} : vector<128x32xf32>, vector<32x2xf32>, vector<128x2xf32> -> vector<128x2xf32>
    %c0_3 = arith.constant 0 : index
    %c0_4 = arith.constant 0 : index
    %3 = vector.load %arg4[%c0_3, %c0_4] : memref<128x1xf32, #tpu.memory_space<vmem>>, vector<128x1xf32>
    %4 = vector.broadcast %3 : vector<128x1xf32> to vector<128x2xf32>
    %5 = arith.addf %2, %4 : vector<128x2xf32>
    %c0_5 = arith.constant 0 : index
    %c0_6 = arith.constant 0 : index
    %6 = vector.load %arg2[%c0_5, %c0_6] : memref<2x128xf32, #tpu.memory_space<vmem>>, vector<2x128xf32>
    %7 = vector.extract_strided_slice %6 {offsets = [0, 2], sizes = [2, 124], strides = [1, 1]} : vector<2x128xf32> to vector<2x124xf32>
    %c0_7 = arith.constant 0 : index
    %c0_8 = arith.constant 0 : index
    %8 = vector.load %arg0[%c0_7, %c0_8] : memref<8x128xf32, #tpu.memory_space<vmem>>, vector<8x128xf32>
    %c0_9 = arith.constant 0 : index
    %c0_10 = arith.constant 0 : index
    %9 = vector.load %arg6[%c0_9, %c0_10] : memref<32x1xf32, #tpu.memory_space<vmem>>, vector<32x1xf32>
    %c0_11 = arith.constant 0 : index
    %c0_12 = arith.constant 0 : index
    %c0_13 = arith.constant 0 : index
    %10 = vector.load %arg5[%c0_11, %c0_12, %c0_13] : memref<5x32x8xf32, #tpu.memory_space<vmem>>, vector<1x32x8xf32>
    %11 = vector.shape_cast %10 : vector<1x32x8xf32> to vector<32x8xf32>
    %12 = vector.extract_strided_slice %8 {offsets = [0, 0], sizes = [8, 124], strides = [1, 1]} : vector<8x128xf32> to vector<8x124xf32>
    %cst_14 = arith.constant dense<0.000000e+00> : vector<32x124xf32>
    %13 = tpu.matmul %11, %12, %cst_14 {dimension_numbers = #tpu.dot_dimension_numbers<[1], [0], [0], [1], [0, 0, 1, 1], [], []>} : vector<32x8xf32>, vector<8x124xf32>, vector<32x124xf32> -> vector<32x124xf32>
    %14 = vector.broadcast %9 : vector<32x1xf32> to vector<32x124xf32>
    %15 = arith.addf %14, %13 : vector<32x124xf32>
    %c1 = arith.constant 1 : index
    %c0_15 = arith.constant 0 : index
    %c0_16 = arith.constant 0 : index
    %16 = vector.load %arg5[%c1, %c0_15, %c0_16] : memref<5x32x8xf32, #tpu.memory_space<vmem>>, vector<1x32x8xf32>
    %17 = vector.shape_cast %16 : vector<1x32x8xf32> to vector<32x8xf32>
    %18 = vector.extract_strided_slice %8 {offsets = [0, 1], sizes = [8, 124], strides = [1, 1]} : vector<8x128xf32> to vector<8x124xf32>
    %cst_17 = arith.constant dense<0.000000e+00> : vector<32x124xf32>
    %19 = tpu.matmul %17, %18, %cst_17 {dimension_numbers = #tpu.dot_dimension_numbers<[1], [0], [0], [1], [0, 0, 1, 1], [], []>} : vector<32x8xf32>, vector<8x124xf32>, vector<32x124xf32> -> vector<32x124xf32>
    %20 = arith.addf %15, %19 : vector<32x124xf32>
    %c2 = arith.constant 2 : index
    %c0_18 = arith.constant 0 : index
    %c0_19 = arith.constant 0 : index
    %21 = vector.load %arg5[%c2, %c0_18, %c0_19] : memref<5x32x8xf32, #tpu.memory_space<vmem>>, vector<1x32x8xf32>
    %22 = vector.shape_cast %21 : vector<1x32x8xf32> to vector<32x8xf32>
    %23 = vector.extract_strided_slice %8 {offsets = [0, 2], sizes = [8, 124], strides = [1, 1]} : vector<8x128xf32> to vector<8x124xf32>
    %cst_20 = arith.constant dense<0.000000e+00> : vector<32x124xf32>
    %24 = tpu.matmul %22, %23, %cst_20 {dimension_numbers = #tpu.dot_dimension_numbers<[1], [0], [0], [1], [0, 0, 1, 1], [], []>} : vector<32x8xf32>, vector<8x124xf32>, vector<32x124xf32> -> vector<32x124xf32>
    %25 = arith.addf %20, %24 : vector<32x124xf32>
    %c3 = arith.constant 3 : index
    %c0_21 = arith.constant 0 : index
    %c0_22 = arith.constant 0 : index
    %26 = vector.load %arg5[%c3, %c0_21, %c0_22] : memref<5x32x8xf32, #tpu.memory_space<vmem>>, vector<1x32x8xf32>
    %27 = vector.shape_cast %26 : vector<1x32x8xf32> to vector<32x8xf32>
    %28 = vector.extract_strided_slice %8 {offsets = [0, 3], sizes = [8, 124], strides = [1, 1]} : vector<8x128xf32> to vector<8x124xf32>
    %cst_23 = arith.constant dense<0.000000e+00> : vector<32x124xf32>
    %29 = tpu.matmul %27, %28, %cst_23 {dimension_numbers = #tpu.dot_dimension_numbers<[1], [0], [0], [1], [0, 0, 1, 1], [], []>} : vector<32x8xf32>, vector<8x124xf32>, vector<32x124xf32> -> vector<32x124xf32>
    %30 = arith.addf %25, %29 : vector<32x124xf32>
    %c4 = arith.constant 4 : index
    %c0_24 = arith.constant 0 : index
    %c0_25 = arith.constant 0 : index
    %31 = vector.load %arg5[%c4, %c0_24, %c0_25] : memref<5x32x8xf32, #tpu.memory_space<vmem>>, vector<1x32x8xf32>
    %32 = vector.shape_cast %31 : vector<1x32x8xf32> to vector<32x8xf32>
    %33 = vector.extract_strided_slice %8 {offsets = [0, 4], sizes = [8, 124], strides = [1, 1]} : vector<8x128xf32> to vector<8x124xf32>
    %cst_26 = arith.constant dense<0.000000e+00> : vector<32x124xf32>
    %34 = tpu.matmul %32, %33, %cst_26 {dimension_numbers = #tpu.dot_dimension_numbers<[1], [0], [0], [1], [0, 0, 1, 1], [], []>} : vector<32x8xf32>, vector<8x124xf32>, vector<32x124xf32> -> vector<32x124xf32>
    %35 = arith.addf %30, %34 : vector<32x124xf32>
    %36 = vector.extract_strided_slice %7 {offsets = [0, 0], sizes = [1, 124], strides = [1, 1]} : vector<2x124xf32> to vector<1x124xf32>
    %37 = vector.extract_strided_slice %5 {offsets = [0, 0], sizes = [32, 1], strides = [1, 1]} : vector<128x2xf32> to vector<32x1xf32>
    %38 = vector.broadcast %37 : vector<32x1xf32> to vector<32x124xf32>
    %39 = vector.broadcast %36 : vector<1x124xf32> to vector<32x124xf32>
    %40 = arith.mulf %38, %39 : vector<32x124xf32>
    %41 = vector.extract_strided_slice %5 {offsets = [32, 0], sizes = [32, 1], strides = [1, 1]} : vector<128x2xf32> to vector<32x1xf32>
    %42 = vector.broadcast %41 : vector<32x1xf32> to vector<32x124xf32>
    %43 = vector.broadcast %36 : vector<1x124xf32> to vector<32x124xf32>
    %44 = arith.mulf %42, %43 : vector<32x124xf32>
    %45 = vector.extract_strided_slice %7 {offsets = [1, 0], sizes = [1, 124], strides = [1, 1]} : vector<2x124xf32> to vector<1x124xf32>
    %46 = vector.extract_strided_slice %5 {offsets = [0, 1], sizes = [32, 1], strides = [1, 1]} : vector<128x2xf32> to vector<32x1xf32>
    %47 = vector.broadcast %46 : vector<32x1xf32> to vector<32x124xf32>
    %48 = vector.broadcast %45 : vector<1x124xf32> to vector<32x124xf32>
    %49 = arith.mulf %47, %48 : vector<32x124xf32>
    %50 = vector.extract_strided_slice %5 {offsets = [32, 1], sizes = [32, 1], strides = [1, 1]} : vector<128x2xf32> to vector<32x1xf32>
    %51 = vector.broadcast %50 : vector<32x1xf32> to vector<32x124xf32>
    %52 = vector.broadcast %45 : vector<1x124xf32> to vector<32x124xf32>
    %53 = arith.mulf %51, %52 : vector<32x124xf32>
    %54 = arith.addf %40, %49 : vector<32x124xf32>
    %55 = arith.addf %44, %53 : vector<32x124xf32>
    %cst_27 = arith.constant 0.000000e+00 : f32
    %56 = vector.broadcast %cst_27 : f32 to vector<32x124xf32>
    %57 = arith.maximumf %35, %56 : vector<32x124xf32>
    %58 = arith.mulf %57, %54 : vector<32x124xf32>
    %59 = arith.addf %58, %55 : vector<32x124xf32>
    %cst_28 = arith.constant 0.000000e+00 : f32
    %60 = vector.broadcast %cst_28 : f32 to vector<32x2xf32>
    %61 = tpu.concatenate %60, %59, %60 in 1 : vector<32x2xf32>, vector<32x124xf32>, vector<32x2xf32> -> vector<32x128xf32>
    %c0_29 = arith.constant 0 : index
    %c0_30 = arith.constant 0 : index
    %62 = vector.load %arg8[%c0_29, %c0_30] : memref<32x1xf32, #tpu.memory_space<vmem>>, vector<32x1xf32>
    %c0_31 = arith.constant 0 : index
    %c0_32 = arith.constant 0 : index
    %c0_33 = arith.constant 0 : index
    %63 = vector.load %arg7[%c0_31, %c0_32, %c0_33] : memref<5x32x32xf32, #tpu.memory_space<vmem>>, vector<1x32x32xf32>
    %64 = vector.shape_cast %63 : vector<1x32x32xf32> to vector<32x32xf32>
    %65 = vector.extract_strided_slice %61 {offsets = [0, 0], sizes = [32, 124], strides = [1, 1]} : vector<32x128xf32> to vector<32x124xf32>
    %cst_34 = arith.constant dense<0.000000e+00> : vector<32x124xf32>
    %66 = tpu.matmul %64, %65, %cst_34 {dimension_numbers = #tpu.dot_dimension_numbers<[1], [0], [0], [1], [0, 0, 1, 1], [], []>} : vector<32x32xf32>, vector<32x124xf32>, vector<32x124xf32> -> vector<32x124xf32>
    %67 = vector.broadcast %62 : vector<32x1xf32> to vector<32x124xf32>
    %68 = arith.addf %67, %66 : vector<32x124xf32>
    %c1_35 = arith.constant 1 : index
    %c0_36 = arith.constant 0 : index
    %c0_37 = arith.constant 0 : index
    %69 = vector.load %arg7[%c1_35, %c0_36, %c0_37] : memref<5x32x32xf32, #tpu.memory_space<vmem>>, vector<1x32x32xf32>
    %70 = vector.shape_cast %69 : vector<1x32x32xf32> to vector<32x32xf32>
    %71 = vector.extract_strided_slice %61 {offsets = [0, 1], sizes = [32, 124], strides = [1, 1]} : vector<32x128xf32> to vector<32x124xf32>
    %cst_38 = arith.constant dense<0.000000e+00> : vector<32x124xf32>
    %72 = tpu.matmul %70, %71, %cst_38 {dimension_numbers = #tpu.dot_dimension_numbers<[1], [0], [0], [1], [0, 0, 1, 1], [], []>} : vector<32x32xf32>, vector<32x124xf32>, vector<32x124xf32> -> vector<32x124xf32>
    %73 = arith.addf %68, %72 : vector<32x124xf32>
    %c2_39 = arith.constant 2 : index
    %c0_40 = arith.constant 0 : index
    %c0_41 = arith.constant 0 : index
    %74 = vector.load %arg7[%c2_39, %c0_40, %c0_41] : memref<5x32x32xf32, #tpu.memory_space<vmem>>, vector<1x32x32xf32>
    %75 = vector.shape_cast %74 : vector<1x32x32xf32> to vector<32x32xf32>
    %76 = vector.extract_strided_slice %61 {offsets = [0, 2], sizes = [32, 124], strides = [1, 1]} : vector<32x128xf32> to vector<32x124xf32>
    %cst_42 = arith.constant dense<0.000000e+00> : vector<32x124xf32>
    %77 = tpu.matmul %75, %76, %cst_42 {dimension_numbers = #tpu.dot_dimension_numbers<[1], [0], [0], [1], [0, 0, 1, 1], [], []>} : vector<32x32xf32>, vector<32x124xf32>, vector<32x124xf32> -> vector<32x124xf32>
    %78 = arith.addf %73, %77 : vector<32x124xf32>
    %c3_43 = arith.constant 3 : index
    %c0_44 = arith.constant 0 : index
    %c0_45 = arith.constant 0 : index
    %79 = vector.load %arg7[%c3_43, %c0_44, %c0_45] : memref<5x32x32xf32, #tpu.memory_space<vmem>>, vector<1x32x32xf32>
    %80 = vector.shape_cast %79 : vector<1x32x32xf32> to vector<32x32xf32>
    %81 = vector.extract_strided_slice %61 {offsets = [0, 3], sizes = [32, 124], strides = [1, 1]} : vector<32x128xf32> to vector<32x124xf32>
    %cst_46 = arith.constant dense<0.000000e+00> : vector<32x124xf32>
    %82 = tpu.matmul %80, %81, %cst_46 {dimension_numbers = #tpu.dot_dimension_numbers<[1], [0], [0], [1], [0, 0, 1, 1], [], []>} : vector<32x32xf32>, vector<32x124xf32>, vector<32x124xf32> -> vector<32x124xf32>
    %83 = arith.addf %78, %82 : vector<32x124xf32>
    %c4_47 = arith.constant 4 : index
    %c0_48 = arith.constant 0 : index
    %c0_49 = arith.constant 0 : index
    %84 = vector.load %arg7[%c4_47, %c0_48, %c0_49] : memref<5x32x32xf32, #tpu.memory_space<vmem>>, vector<1x32x32xf32>
    %85 = vector.shape_cast %84 : vector<1x32x32xf32> to vector<32x32xf32>
    %86 = vector.extract_strided_slice %61 {offsets = [0, 4], sizes = [32, 124], strides = [1, 1]} : vector<32x128xf32> to vector<32x124xf32>
    %cst_50 = arith.constant dense<0.000000e+00> : vector<32x124xf32>
    %87 = tpu.matmul %85, %86, %cst_50 {dimension_numbers = #tpu.dot_dimension_numbers<[1], [0], [0], [1], [0, 0, 1, 1], [], []>} : vector<32x32xf32>, vector<32x124xf32>, vector<32x124xf32> -> vector<32x124xf32>
    %88 = arith.addf %83, %87 : vector<32x124xf32>
    %89 = vector.extract_strided_slice %7 {offsets = [0, 0], sizes = [1, 124], strides = [1, 1]} : vector<2x124xf32> to vector<1x124xf32>
    %90 = vector.extract_strided_slice %5 {offsets = [64, 0], sizes = [32, 1], strides = [1, 1]} : vector<128x2xf32> to vector<32x1xf32>
    %91 = vector.broadcast %90 : vector<32x1xf32> to vector<32x124xf32>
    %92 = vector.broadcast %89 : vector<1x124xf32> to vector<32x124xf32>
    %93 = arith.mulf %91, %92 : vector<32x124xf32>
    %94 = vector.extract_strided_slice %5 {offsets = [96, 0], sizes = [32, 1], strides = [1, 1]} : vector<128x2xf32> to vector<32x1xf32>
    %95 = vector.broadcast %94 : vector<32x1xf32> to vector<32x124xf32>
    %96 = vector.broadcast %89 : vector<1x124xf32> to vector<32x124xf32>
    %97 = arith.mulf %95, %96 : vector<32x124xf32>
    %98 = vector.extract_strided_slice %7 {offsets = [1, 0], sizes = [1, 124], strides = [1, 1]} : vector<2x124xf32> to vector<1x124xf32>
    %99 = vector.extract_strided_slice %5 {offsets = [64, 1], sizes = [32, 1], strides = [1, 1]} : vector<128x2xf32> to vector<32x1xf32>
    %100 = vector.broadcast %99 : vector<32x1xf32> to vector<32x124xf32>
    %101 = vector.broadcast %98 : vector<1x124xf32> to vector<32x124xf32>
    %102 = arith.mulf %100, %101 : vector<32x124xf32>
    %103 = vector.extract_strided_slice %5 {offsets = [96, 1], sizes = [32, 1], strides = [1, 1]} : vector<128x2xf32> to vector<32x1xf32>
    %104 = vector.broadcast %103 : vector<32x1xf32> to vector<32x124xf32>
    %105 = vector.broadcast %98 : vector<1x124xf32> to vector<32x124xf32>
    %106 = arith.mulf %104, %105 : vector<32x124xf32>
    %107 = arith.addf %93, %102 : vector<32x124xf32>
    %108 = arith.addf %97, %106 : vector<32x124xf32>
    %cst_51 = arith.constant 0.000000e+00 : f32
    %109 = vector.broadcast %cst_51 : f32 to vector<32x124xf32>
    %110 = arith.maximumf %88, %109 : vector<32x124xf32>
    %111 = arith.mulf %110, %107 : vector<32x124xf32>
    %112 = arith.addf %111, %108 : vector<32x124xf32>
    %cst_52 = arith.constant 0.000000e+00 : f32
    %113 = vector.broadcast %cst_52 : f32 to vector<32x2xf32>
    %114 = tpu.concatenate %113, %112, %113 in 1 : vector<32x2xf32>, vector<32x124xf32>, vector<32x2xf32> -> vector<32x128xf32>
    %c0_53 = arith.constant 0 : index
    %c0_54 = arith.constant 0 : index
    %115 = vector.load %arg10[%c0_53, %c0_54] : memref<8x1xf32, #tpu.memory_space<vmem>>, vector<8x1xf32>
    %c0_55 = arith.constant 0 : index
    %c0_56 = arith.constant 0 : index
    %c0_57 = arith.constant 0 : index
    %116 = vector.load %arg9[%c0_55, %c0_56, %c0_57] : memref<5x8x32xf32, #tpu.memory_space<vmem>>, vector<1x8x32xf32>
    %117 = vector.shape_cast %116 : vector<1x8x32xf32> to vector<8x32xf32>
    %118 = vector.extract_strided_slice %114 {offsets = [0, 0], sizes = [32, 124], strides = [1, 1]} : vector<32x128xf32> to vector<32x124xf32>
    %cst_58 = arith.constant dense<0.000000e+00> : vector<8x124xf32>
    %119 = tpu.matmul %117, %118, %cst_58 {dimension_numbers = #tpu.dot_dimension_numbers<[1], [0], [0], [1], [0, 0, 1, 1], [], []>} : vector<8x32xf32>, vector<32x124xf32>, vector<8x124xf32> -> vector<8x124xf32>
    %120 = vector.broadcast %115 : vector<8x1xf32> to vector<8x124xf32>
    %121 = arith.addf %120, %119 : vector<8x124xf32>
    %c1_59 = arith.constant 1 : index
    %c0_60 = arith.constant 0 : index
    %c0_61 = arith.constant 0 : index
    %122 = vector.load %arg9[%c1_59, %c0_60, %c0_61] : memref<5x8x32xf32, #tpu.memory_space<vmem>>, vector<1x8x32xf32>
    %123 = vector.shape_cast %122 : vector<1x8x32xf32> to vector<8x32xf32>
    %124 = vector.extract_strided_slice %114 {offsets = [0, 1], sizes = [32, 124], strides = [1, 1]} : vector<32x128xf32> to vector<32x124xf32>
    %cst_62 = arith.constant dense<0.000000e+00> : vector<8x124xf32>
    %125 = tpu.matmul %123, %124, %cst_62 {dimension_numbers = #tpu.dot_dimension_numbers<[1], [0], [0], [1], [0, 0, 1, 1], [], []>} : vector<8x32xf32>, vector<32x124xf32>, vector<8x124xf32> -> vector<8x124xf32>
    %126 = arith.addf %121, %125 : vector<8x124xf32>
    %c2_63 = arith.constant 2 : index
    %c0_64 = arith.constant 0 : index
    %c0_65 = arith.constant 0 : index
    %127 = vector.load %arg9[%c2_63, %c0_64, %c0_65] : memref<5x8x32xf32, #tpu.memory_space<vmem>>, vector<1x8x32xf32>
    %128 = vector.shape_cast %127 : vector<1x8x32xf32> to vector<8x32xf32>
    %129 = vector.extract_strided_slice %114 {offsets = [0, 2], sizes = [32, 124], strides = [1, 1]} : vector<32x128xf32> to vector<32x124xf32>
    %cst_66 = arith.constant dense<0.000000e+00> : vector<8x124xf32>
    %130 = tpu.matmul %128, %129, %cst_66 {dimension_numbers = #tpu.dot_dimension_numbers<[1], [0], [0], [1], [0, 0, 1, 1], [], []>} : vector<8x32xf32>, vector<32x124xf32>, vector<8x124xf32> -> vector<8x124xf32>
    %131 = arith.addf %126, %130 : vector<8x124xf32>
    %c3_67 = arith.constant 3 : index
    %c0_68 = arith.constant 0 : index
    %c0_69 = arith.constant 0 : index
    %132 = vector.load %arg9[%c3_67, %c0_68, %c0_69] : memref<5x8x32xf32, #tpu.memory_space<vmem>>, vector<1x8x32xf32>
    %133 = vector.shape_cast %132 : vector<1x8x32xf32> to vector<8x32xf32>
    %134 = vector.extract_strided_slice %114 {offsets = [0, 3], sizes = [32, 124], strides = [1, 1]} : vector<32x128xf32> to vector<32x124xf32>
    %cst_70 = arith.constant dense<0.000000e+00> : vector<8x124xf32>
    %135 = tpu.matmul %133, %134, %cst_70 {dimension_numbers = #tpu.dot_dimension_numbers<[1], [0], [0], [1], [0, 0, 1, 1], [], []>} : vector<8x32xf32>, vector<32x124xf32>, vector<8x124xf32> -> vector<8x124xf32>
    %136 = arith.addf %131, %135 : vector<8x124xf32>
    %c4_71 = arith.constant 4 : index
    %c0_72 = arith.constant 0 : index
    %c0_73 = arith.constant 0 : index
    %137 = vector.load %arg9[%c4_71, %c0_72, %c0_73] : memref<5x8x32xf32, #tpu.memory_space<vmem>>, vector<1x8x32xf32>
    %138 = vector.shape_cast %137 : vector<1x8x32xf32> to vector<8x32xf32>
    %139 = vector.extract_strided_slice %114 {offsets = [0, 4], sizes = [32, 124], strides = [1, 1]} : vector<32x128xf32> to vector<32x124xf32>
    %cst_74 = arith.constant dense<0.000000e+00> : vector<8x124xf32>
    %140 = tpu.matmul %138, %139, %cst_74 {dimension_numbers = #tpu.dot_dimension_numbers<[1], [0], [0], [1], [0, 0, 1, 1], [], []>} : vector<8x32xf32>, vector<32x124xf32>, vector<8x124xf32> -> vector<8x124xf32>
    %141 = arith.addf %136, %140 : vector<8x124xf32>
    %cst_75 = arith.constant 0.000000e+00 : f32
    %142 = vector.broadcast %cst_75 : f32 to vector<8x2xf32>
    %143 = tpu.concatenate %142, %141, %142 in 1 : vector<8x2xf32>, vector<8x124xf32>, vector<8x2xf32> -> vector<8x128xf32>
    %c0_76 = arith.constant 0 : index
    %c0_77 = arith.constant 0 : index
    %144 = vector.load %arg11[%c0_76, %c0_77] : memref<8x128xf32, #tpu.memory_space<vmem>>, vector<8x128xf32>
    tpu.vector_store %arg11[%c0_76, %c0_77], %143 {strides = array<i32>} : memref<8x128xf32, #tpu.memory_space<vmem>>, vector<8x128xf32>,
    return
  }
}

</mosaic_0001>

<llo_original>
// kernel: _forward_impl.1
$region0: #{_forward_impl.1}
  #allocation0 [shape = 'u32[]', space=smem, size = 0x4, offset = 0x4, fixed_abs, tag = 'smem constant byte address 0x4 - core index']
  #allocation1 [shape = 'u32[144,128]{1,0:T(1,128)}', space=vmem, size = 0x12000, scoped, tag = 'internal scratch']
  %s0 = inlined_call_operand.vmem [shape: f32[8,128], index: 0, kind: input, shape index: {}]
  %s1 = inlined_call_operand.vmem [shape: f32[32,2], index: 1, kind: input, shape index: {}]
  %s2 = inlined_call_operand.hbm [shape: f32[2,128], index: 2, kind: input, shape index: {}]
  %s3 = inlined_call_operand.hbm [shape: f32[128,32], index: 3, kind: input, shape index: {}]
  %s4 = inlined_call_operand.hbm [shape: f32[128,1], index: 4, kind: input, shape index: {}]
  %s5 = inlined_call_operand.hbm [shape: f32[5,32,8], index: 5, kind: input, shape index: {}]
  %s6 = inlined_call_operand.hbm [shape: f32[32,1], index: 6, kind: input, shape index: {}]
  %s7 = inlined_call_operand.vmem [shape: f32[5,32,32], index: 7, kind: input, shape index: {}]
  %s8 = inlined_call_operand.hbm [shape: f32[32,1], index: 8, kind: input, shape index: {}]
  %s9 = inlined_call_operand.hbm [shape: f32[5,8,32], index: 9, kind: input, shape index: {}]
  %s10 = inlined_call_operand.vmem [shape: f32[8,1], index: 10, kind: input, shape index: {}]
  %s11 = inlined_call_operand.vmem [shape: f32[8,128], index: 11, kind: output, shape index: {}]
  %s12 = sld [smem:[#allocation0]]
  $region82: #{_forward_impl.1} parent=0
    _
  %s14 = ssub.s32 1, %s12
  %s15 = scalar_select 0, %s14, %s12
  $region1: #{_forward_impl.1} parent=0
    #allocation2 [shape = 'u8[1024]{0}', space=vmem, size = 0x400, scoped, tag = 'input window, operand 2, single buffered']
    #allocation3 [shape = 's32[1]{0}', space=sflag, size = 0x4, scoped, tag = 'scoped memory for _forward_impl.1']
    #allocation4 [shape = 'u8[65536]{0}', space=vmem, size = 0x10000, scoped, tag = 'input window, operand 3, single buffered']
    #allocation5 [shape = 's32[1]{0}', space=sflag, size = 0x4, scoped, tag = 'scoped memory for _forward_impl.1']
    #allocation6 [shape = 'u8[65536]{0}', space=vmem, size = 0x10000, scoped, tag = 'input window, operand 4, single buffered']
    #allocation7 [shape = 'u8[81920]{0}', space=vmem, size = 0x14000, scoped, tag = 'input window, operand 5, single buffered']
    #allocation8 [shape = 's32[1]{0}', space=sflag, size = 0x4, scoped, tag = 'scoped memory for _forward_impl.1']
    #allocation9 [shape = 'u8[16384]{0}', space=vmem, size = 0x4000, scoped, tag = 'input window, operand 6, single buffered']
    #allocation10 [shape = 'u8[16384]{0}', space=vmem, size = 0x4000, scoped, tag = 'input window, operand 8, single buffered']
    #allocation11 [shape = 's32[1]{0}', space=sflag, size = 0x4, scoped, tag = 'scoped memory for _forward_impl.1']
    #allocation12 [shape = 'u8[20480]{0}', space=vmem, size = 0x5000, scoped, tag = 'input window, operand 9, single buffered']
    %16 = vsyncpa [#allocation3], 0
    %17 = vsyncpa [#allocation5], 0
    %18 = vsyncpa [#allocation8], 0
    %19 = vsyncpa [#allocation11], 0
    // Predicated region
    $region2: #{_forward_impl.1} parent=1 // pred_check
      _
    $region3: #{_forward_impl.1} parent=1 // pred_check_branch
      %21 = sbr.rel (0) target = $region5
    $region4: #{_forward_impl.1} parent=1 // pred_region
      _
    $region5: #{_forward_impl.1} parent=1 // pred_fallthru
      _
    // Predicated region
    $region6: #{_forward_impl.1} parent=1 // pred_check
      _
    $region7: #{_forward_impl.1} parent=1 // pred_check_branch
      %23 = sbr.rel (0) target = $region9
    $region8: #{_forward_impl.1} parent=1 // pred_region
      _
    $region9: #{_forward_impl.1} parent=1 // pred_fallthru
      _
    // Predicated region
    $region10: #{_forward_impl.1} parent=1 // pred_check
      _
    $region11: #{_forward_impl.1} parent=1 // pred_check_branch
      %25 = sbr.rel (0) target = $region13
    $region12: #{_forward_impl.1} parent=1 // pred_region
      %s27 = ssub.s32 32, 32
      %28 = vsyncadd [#allocation3], %s27
      %s30 = sshll.u32 [#allocation2], 4
      %s31 = int_to_ptr.vmem [resolvable:$true] %s30
      %33 = dma.hbm_to_vmem [thread:$0]  %s2, 32, %s31, [#allocation3]
    $region13: #{_forward_impl.1} parent=1 // pred_fallthru
      _
    // Predicated region
    $region14: #{_forward_impl.1} parent=1 // pred_check
      _
    $region15: #{_forward_impl.1} parent=1 // pred_check_branch
      %35 = sbr.rel (0) target = $region17
    $region16: #{_forward_impl.1} parent=1 // pred_region
      %s37 = ssub.s32 2048, 2048
      %38 = vsyncadd [#allocation5], %s37
      %s39 = sshll.u32 [#allocation4], 4
      %s40 = int_to_ptr.vmem [resolvable:$true] %s39
      %45 = dma.hbm_to_vmem [thread:$0]  %s3, 2048, %s40, [#allocation5], 128, 128, 8
    $region17: #{_forward_impl.1} parent=1 // pred_fallthru
      _
    // Predicated region
    $region18: #{_forward_impl.1} parent=1 // pred_check
      _
    $region19: #{_forward_impl.1} parent=1 // pred_check_branch
      %47 = sbr.rel (0) target = $region21
    $region20: #{_forward_impl.1} parent=1 // pred_region
      %s49 = ssub.s32 2048, 2048
      %50 = vsyncadd [#allocation5], %s49
      %s51 = sshll.u32 [#allocation6], 4
      %s52 = int_to_ptr.vmem [resolvable:$true] %s51
      %57 = dma.hbm_to_vmem [thread:$0]  %s4, 2048, %s52, [#allocation5], 128, 128, 8
    $region21: #{_forward_impl.1} parent=1 // pred_fallthru
      _
    // Predicated region
    $region22: #{_forward_impl.1} parent=1 // pred_check
      _
    $region23: #{_forward_impl.1} parent=1 // pred_check_branch
      %59 = sbr.rel (0) target = $region25
    $region24: #{_forward_impl.1} parent=1 // pred_region
      %s61 = ssub.s32 2560, 2560
      %62 = vsyncadd [#allocation8], %s61
      %s63 = sshll.u32 [#allocation7], 4
      %s64 = int_to_ptr.vmem [resolvable:$true] %s63
      %69 = dma.hbm_to_vmem [thread:$0]  %s5, 2560, %s64, [#allocation8], 128, 128, 8
    $region25: #{_forward_impl.1} parent=1 // pred_fallthru
      _
    // Predicated region
    $region26: #{_forward_impl.1} parent=1 // pred_check
      _
    $region27: #{_forward_impl.1} parent=1 // pred_check_branch
      %71 = sbr.rel (0) target = $region29
    $region28: #{_forward_impl.1} parent=1 // pred_region
      %s73 = ssub.s32 512, 512
      %74 = vsyncadd [#allocation8], %s73
      %s75 = sshll.u32 [#allocation9], 4
      %s76 = int_to_ptr.vmem [resolvable:$true] %s75
      %81 = dma.hbm_to_vmem [thread:$0]  %s6, 512, %s76, [#allocation8], 128, 128, 8
    $region29: #{_forward_impl.1} parent=1 // pred_fallthru
      _
    // Predicated region
    $region30: #{_forward_impl.1} parent=1 // pred_check
      _
    $region31: #{_forward_impl.1} parent=1 // pred_check_branch
      %83 = sbr.rel (0) target = $region33
    $region32: #{_forward_impl.1} parent=1 // pred_region
      _
    $region33: #{_forward_impl.1} parent=1 // pred_fallthru
      _
    // Predicated region
    $region34: #{_forward_impl.1} parent=1 // pred_check
      _
    $region35: #{_forward_impl.1} parent=1 // pred_check_branch
      %85 = sbr.rel (0) target = $region37
    $region36: #{_forward_impl.1} parent=1 // pred_region
      %s87 = ssub.s32 512, 512
      %88 = vsyncadd [#allocation11], %s87
      %s89 = sshll.u32 [#allocation10], 4
      %s90 = int_to_ptr.vmem [resolvable:$true] %s89
      %95 = dma.hbm_to_vmem [thread:$0]  %s8, 512, %s90, [#allocation11], 128, 128, 8
    $region37: #{_forward_impl.1} parent=1 // pred_fallthru
      _
    // Predicated region
    $region38: #{_forward_impl.1} parent=1 // pred_check
      _
    $region39: #{_forward_impl.1} parent=1 // pred_check_branch
      %97 = sbr.rel (0) target = $region41
    $region40: #{_forward_impl.1} parent=1 // pred_region
      %s99 = ssub.s32 640, 640
      %100 = vsyncadd [#allocation11], %s99
      %s101 = sshll.u32 [#allocation12], 4
      %s102 = int_to_ptr.vmem [resolvable:$true] %s101
      %107 = dma.hbm_to_vmem [thread:$0]  %s9, 640, %s102, [#allocation11], 128, 128, 8
    $region41: #{_forward_impl.1} parent=1 // pred_fallthru
      _
    // Predicated region
    $region42: #{_forward_impl.1} parent=1 // pred_check
      _
    $region43: #{_forward_impl.1} parent=1 // pred_check_branch
      %109 = sbr.rel (0) target = $region45
    $region44: #{_forward_impl.1} parent=1 // pred_region
      _
    $region45: #{_forward_impl.1} parent=1 // pred_fallthru
      _
    // Predicated region
    $region46: #{_forward_impl.1} parent=1 // pred_check
      _
    $region47: #{_forward_impl.1} parent=1 // pred_check_branch
      %111 = sbr.rel (0) target = $region49
    $region48: #{_forward_impl.1} parent=1 // pred_region
      %112 = dma.done [#allocation3], 32
    $region49: #{_forward_impl.1} parent=1 // pred_fallthru
      _
    // Predicated region
    $region50: #{_forward_impl.1} parent=1 // pred_check
      _
    $region51: #{_forward_impl.1} parent=1 // pred_check_branch
      %114 = sbr.rel (0) target = $region53
    $region52: #{_forward_impl.1} parent=1 // pred_region
      %115 = dma.done [#allocation5], 2048
    $region53: #{_forward_impl.1} parent=1 // pred_fallthru
      _
    // Predicated region
    $region54: #{_forward_impl.1} parent=1 // pred_check
      _
    $region55: #{_forward_impl.1} parent=1 // pred_check_branch
      %117 = sbr.rel (0) target = $region57
    $region56: #{_forward_impl.1} parent=1 // pred_region
      %118 = dma.done [#allocation5], 2048
    $region57: #{_forward_impl.1} parent=1 // pred_fallthru
      _
    // Predicated region
    $region58: #{_forward_impl.1} parent=1 // pred_check
      _
    $region59: #{_forward_impl.1} parent=1 // pred_check_branch
      %120 = sbr.rel (0) target = $region61
    $region60: #{_forward_impl.1} parent=1 // pred_region
      %121 = dma.done [#allocation8], 2560
    $region61: #{_forward_impl.1} parent=1 // pred_fallthru
      _
    // Predicated region
    $region62: #{_forward_impl.1} parent=1 // pred_check
      _
    $region63: #{_forward_impl.1} parent=1 // pred_check_branch
      %123 = sbr.rel (0) target = $region65
    $region64: #{_forward_impl.1} parent=1 // pred_region
      %124 = dma.done [#allocation8], 512
    $region65: #{_forward_impl.1} parent=1 // pred_fallthru
      _
    // Predicated region
    $region66: #{_forward_impl.1} parent=1 // pred_check
      _
    $region67: #{_forward_impl.1} parent=1 // pred_check_branch
      %126 = sbr.rel (0) target = $region69
    $region68: #{_forward_impl.1} parent=1 // pred_region
      %127 = dma.done [#allocation11], 512
    $region69: #{_forward_impl.1} parent=1 // pred_fallthru
      _
    // Predicated region
    $region70: #{_forward_impl.1} parent=1 // pred_check
      _
    $region71: #{_forward_impl.1} parent=1 // pred_check_branch
      %129 = sbr.rel (0) target = $region73
    $region72: #{_forward_impl.1} parent=1 // pred_region
      %130 = dma.done [#allocation11], 640
    $region73: #{_forward_impl.1} parent=1 // pred_fallthru
      _
    %v131 = vld [vmem:[#allocation4] sm:$0xff]
    %v132 = vld [vmem:[#allocation4 + $0x8] sm:$0xff]
    %v133 = vld [vmem:[#allocation4 + $0x10] sm:$0xff]
    %v134 = vld [vmem:[#allocation4 + $0x18] sm:$0xff]
    %v135 = vld [vmem:[#allocation4 + $0x20] sm:$0xff]
    %v136 = vld [vmem:[#allocation4 + $0x28] sm:$0xff]
    %v137 = vld [vmem:[#allocation4 + $0x30] sm:$0xff]
    %v138 = vld [vmem:[#allocation4 + $0x38] sm:$0xff]
    %v139 = vld [vmem:[#allocation4 + $0x40] sm:$0xff]
    %v140 = vld [vmem:[#allocation4 + $0x48] sm:$0xff]
    %v141 = vld [vmem:[#allocation4 + $0x50] sm:$0xff]
    %v142 = vld [vmem:[#allocation4 + $0x58] sm:$0xff]
    %v143 = vld [vmem:[#allocation4 + $0x60] sm:$0xff]
    %v144 = vld [vmem:[#allocation4 + $0x68] sm:$0xff]
    %v145 = vld [vmem:[#allocation4 + $0x70] sm:$0xff]
    %v146 = vld [vmem:[#allocation4 + $0x78] sm:$0xff]
    %v147 = vld [vmem:[%s1] sm:$0xff]
    %v148 = vld [vmem:[%s1 + $0x8] sm:$0xff]
    %v149 = vld [vmem:[%s1 + $0x10] sm:$0xff]
    %v150 = vld [vmem:[%s1 + $0x18] sm:$0xff]
    %v151 = vld [vmem:[#allocation6] sm:$0xff]
    %v152 = vld [vmem:[#allocation6 + $0x8] sm:$0xff]
    %v153 = vld [vmem:[#allocation6 + $0x10] sm:$0xff]
    %v154 = vld [vmem:[#allocation6 + $0x18] sm:$0xff]
    %v155 = vld [vmem:[#allocation6 + $0x20] sm:$0xff]
    %v156 = vld [vmem:[#allocation6 + $0x28] sm:$0xff]
    %v157 = vld [vmem:[#allocation6 + $0x30] sm:$0xff]
    %v158 = vld [vmem:[#allocation6 + $0x38] sm:$0xff]
    %v159 = vld [vmem:[#allocation6 + $0x40] sm:$0xff]
    %v160 = vld [vmem:[#allocation6 + $0x48] sm:$0xff]
    %v161 = vld [vmem:[#allocation6 + $0x50] sm:$0xff]
    %v162 = vld [vmem:[#allocation6 + $0x58] sm:$0xff]
    %v163 = vld [vmem:[#allocation6 + $0x60] sm:$0xff]
    %v164 = vld [vmem:[#allocation6 + $0x68] sm:$0xff]
    %v165 = vld [vmem:[#allocation6 + $0x70] sm:$0xff]
    %v166 = vld [vmem:[#allocation6 + $0x78] sm:$0xff]
    %168 = vset.pattern.permute.xlu0 0
    %169 = vperm.xlu0 %168, %v151
    %v170 = vpop.permute.xlu0 %169
    %173 = vset.pattern.permute.xlu0 0
    %174 = vperm.xlu0 %173, %v152
    %v175 = vpop.permute.xlu0 %174
    %178 = vset.pattern.permute.xlu0 0
    %179 = vperm.xlu0 %178, %v153
    %v180 = vpop.permute.xlu0 %179
    %183 = vset.pattern.permute.xlu0 0
    %184 = vperm.xlu0 %183, %v154
    %v185 = vpop.permute.xlu0 %184
    %188 = vset.pattern.permute.xlu0 0
    %189 = vperm.xlu0 %188, %v155
    %v190 = vpop.permute.xlu0 %189
    %193 = vset.pattern.permute.xlu0 0
    %194 = vperm.xlu0 %193, %v156
    %v195 = vpop.permute.xlu0 %194
    %198 = vset.pattern.permute.xlu0 0
    %199 = vperm.xlu0 %198, %v157
    %v200 = vpop.permute.xlu0 %199
    %203 = vset.pattern.permute.xlu0 0
    %204 = vperm.xlu0 %203, %v158
    %v205 = vpop.permute.xlu0 %204
    %208 = vset.pattern.permute.xlu0 0
    %209 = vperm.xlu0 %208, %v159
    %v210 = vpop.permute.xlu0 %209
    %213 = vset.pattern.permute.xlu0 0
    %214 = vperm.xlu0 %213, %v160
    %v215 = vpop.permute.xlu0 %214
    %218 = vset.pattern.permute.xlu0 0
    %219 = vperm.xlu0 %218, %v161
    %v220 = vpop.permute.xlu0 %219
    %223 = vset.pattern.permute.xlu0 0
    %224 = vperm.xlu0 %223, %v162
    %v225 = vpop.permute.xlu0 %224
    %228 = vset.pattern.permute.xlu0 0
    %229 = vperm.xlu0 %228, %v163
    %v230 = vpop.permute.xlu0 %229
    %233 = vset.pattern.permute.xlu0 0
    %234 = vperm.xlu0 %233, %v164
    %v235 = vpop.permute.xlu0 %234
    %238 = vset.pattern.permute.xlu0 0
    %239 = vperm.xlu0 %238, %v165
    %v240 = vpop.permute.xlu0 %239
    %243 = vset.pattern.permute.xlu0 0
    %244 = vperm.xlu0 %243, %v166
    %v245 = vpop.permute.xlu0 %244
    %vm247 = vcmask 261120
    %v249 = vsel %vm247, %v131, 0
    %v252 = vsel %vm247, %v132, 0
    %v255 = vsel %vm247, %v133, 0
    %v258 = vsel %vm247, %v134, 0
    %v261 = vsel %vm247, %v135, 0
    %v264 = vsel %vm247, %v136, 0
    %v267 = vsel %vm247, %v137, 0
    %v270 = vsel %vm247, %v138, 0
    %v273 = vsel %vm247, %v139, 0
    %v276 = vsel %vm247, %v140, 0
    %v279 = vsel %vm247, %v141, 0
    %v282 = vsel %vm247, %v142, 0
    %v285 = vsel %vm247, %v143, 0
    %v288 = vsel %vm247, %v144, 0
    %v291 = vsel %vm247, %v145, 0
    %v294 = vsel %vm247, %v146, 0
    %296 = vmatprep.subr.mxu0 0.0
    %297 = vmatpush1.msra.mxu0 %v147
    %298 = vmatprep.subr.mxu0 0.0
    %299 = vmatpush1.msra.mxu0 %v148
    %300 = vmatprep.subr.mxu0 0.0
    %301 = vmatpush1.msra.mxu0 %v149
    %302 = vmatprep.subr.mxu0 0.0
    %303 = vmatpush1.msra.mxu0 %v150
    %304 = vmatprep.subr.mxu0 0.0
    %305 = vmatpush1.msra.mxu0 0.0
    %306 = vmatprep.subr.mxu0 0.0
    %307 = vmatpush1.msra.mxu0 0.0
    %308 = vmatprep.subr.mxu0 0.0
    %309 = vmatpush1.msra.mxu0 0.0
    %310 = vmatprep.subr.mxu0 0.0
    %311 = vmatpush1.msra.mxu0 0.0
    %312 = vmatprep.subr.mxu0 0.0
    %313 = vmatpush1.msra.mxu0 0.0
    %314 = vmatprep.subr.mxu0 0.0
    %315 = vmatpush1.msra.mxu0 0.0
    %316 = vmatprep.subr.mxu0 0.0
    %317 = vmatpush1.msra.mxu0 0.0
    %318 = vmatprep.subr.mxu0 0.0
    %319 = vmatpush1.msra.mxu0 0.0
    %320 = vmatprep.subr.mxu0 0.0
    %321 = vmatpush1.msra.mxu0 0.0
    %322 = vmatprep.subr.mxu0 0.0
    %323 = vmatpush1.msra.mxu0 0.0
    %324 = vmatprep.subr.mxu0 0.0
    %325 = vmatpush1.msra.mxu0 0.0
    %326 = vmatprep.subr.mxu0 0.0
    %327 = vmatpush1.msra.mxu0 0.0
    %328 = vmatprep.subr.mxu0 0.0
    %329 = vmatpush1.msra.mxu0 0.0
    %330 = vmatprep.subr.mxu0 0.0
    %331 = vmatpush1.msra.mxu0 0.0
    %332 = vmatprep.subr.mxu0 0.0
    %333 = vmatpush1.msra.mxu0 0.0
    %334 = vmatprep.subr.mxu0 0.0
    %335 = vmatpush1.msra.mxu0 0.0
    %336 = vmatprep.subr.mxu0 0.0
    %337 = vmatpush1.msra.mxu0 0.0
    %338 = vmatprep.subr.mxu0 0.0
    %339 = vmatpush1.msra.mxu0 0.0
    %340 = vmatprep.subr.mxu0 0.0
    %341 = vmatpush1.msra.mxu0 0.0
    %342 = vmatprep.subr.mxu0 0.0
    %343 = vmatpush1.msra.mxu0 0.0
    %344 = vmatprep.subr.mxu0 0.0
    %345 = vmatpush1.msra.mxu0 0.0
    %346 = vmatprep.subr.mxu0 0.0
    %347 = vmatpush1.msra.mxu0 0.0
    %348 = vmatprep.subr.mxu0 0.0
    %349 = vmatpush1.msra.mxu0 0.0
    %350 = vmatprep.subr.mxu0 0.0
    %351 = vmatpush1.msra.mxu0 0.0
    %352 = vmatprep.subr.mxu0 0.0
    %353 = vmatpush1.msra.mxu0 0.0
    %354 = vmatprep.subr.mxu0 0.0
    %355 = vmatpush1.msra.mxu0 0.0
    %356 = vmatprep.subr.mxu0 0.0
    %357 = vmatpush1.msra.mxu0 0.0
    %358 = vmatprep.subr.mxu0 0.0
    %359 = vmatpush1.msra.mxu0 0.0
    %360 = vmatprep.mubr.f32.mxu0 0.0
    %361 = vmatmul.mubr.f32.gmra.mrb[0].mxu0 %v249
    %v362 = vpop.f32.mrb[0].mxu0
    %v363 = vadd.f32 %v170, %v362
    %v364 = vpop.f32.mrb[0].mxu0
    %365 = vmatprep.mubr.f32.mxu0 0.0
    %366 = vmatmul.mubr.f32.gmra.mrb[0].mxu0 %v252
    %v367 = vpop.f32.mrb[0].mxu0
    %v368 = vadd.f32 %v175, %v367
    %v369 = vpop.f32.mrb[0].mxu0
    %370 = vmatprep.mubr.f32.mxu0 0.0
    %371 = vmatmul.mubr.f32.gmra.mrb[0].mxu0 %v255
    %v372 = vpop.f32.mrb[0].mxu0
    %v373 = vadd.f32 %v180, %v372
    %v374 = vpop.f32.mrb[0].mxu0
    %375 = vmatprep.mubr.f32.mxu0 0.0
    %376 = vmatmul.mubr.f32.gmra.mrb[0].mxu0 %v258
    %v377 = vpop.f32.mrb[0].mxu0
    %v378 = vadd.f32 %v185, %v377
    %v379 = vpop.f32.mrb[0].mxu0
    %380 = vmatprep.mubr.f32.mxu0 0.0
    %381 = vmatmul.mubr.f32.gmra.mrb[0].mxu0 %v261
    %v382 = vpop.f32.mrb[0].mxu0
    %v383 = vadd.f32 %v190, %v382
    %v384 = vpop.f32.mrb[0].mxu0
    %385 = vmatprep.mubr.f32.mxu0 0.0
    %386 = vmatmul.mubr.f32.gmra.mrb[0].mxu0 %v264
    %v387 = vpop.f32.mrb[0].mxu0
    %v388 = vadd.f32 %v195, %v387
    %v389 = vpop.f32.mrb[0].mxu0
    %390 = vmatprep.mubr.f32.mxu0 0.0
    %391 = vmatmul.mubr.f32.gmra.mrb[0].mxu0 %v267
    %v392 = vpop.f32.mrb[0].mxu0
    %v393 = vadd.f32 %v200, %v392
    %v394 = vpop.f32.mrb[0].mxu0
    %395 = vmatprep.mubr.f32.mxu0 0.0
    %396 = vmatmul.mubr.f32.gmra.mrb[0].mxu0 %v270
    %v397 = vpop.f32.mrb[0].mxu0
    %v398 = vadd.f32 %v205, %v397
    %v399 = vpop.f32.mrb[0].mxu0
    %400 = vmatprep.mubr.f32.mxu0 0.0
    %401 = vmatmul.mubr.f32.gmra.mrb[0].mxu0 %v273
    %v402 = vpop.f32.mrb[0].mxu0
    %v403 = vadd.f32 %v210, %v402
    %v404 = vpop.f32.mrb[0].mxu0
    %405 = vmatprep.mubr.f32.mxu0 0.0
    %406 = vmatmul.mubr.f32.gmra.mrb[0].mxu0 %v276
    %v407 = vpop.f32.mrb[0].mxu0
    %v408 = vadd.f32 %v215, %v407
    %v409 = vpop.f32.mrb[0].mxu0
    %410 = vmatprep.mubr.f32.mxu0 0.0
    %411 = vmatmul.mubr.f32.gmra.mrb[0].mxu0 %v279
    %v412 = vpop.f32.mrb[0].mxu0
    %v413 = vadd.f32 %v220, %v412
    %v414 = vpop.f32.mrb[0].mxu0
    %415 = vmatprep.mubr.f32.mxu0 0.0
    %416 = vmatmul.mubr.f32.gmra.mrb[0].mxu0 %v282
    %v417 = vpop.f32.mrb[0].mxu0
    %v418 = vadd.f32 %v225, %v417
    %v419 = vpop.f32.mrb[0].mxu0
    %420 = vmatprep.mubr.f32.mxu0 0.0
    %421 = vmatmul.mubr.f32.gmra.mrb[0].mxu0 %v285
    %v422 = vpop.f32.mrb[0].mxu0
    %v423 = vadd.f32 %v230, %v422
    %v424 = vpop.f32.mrb[0].mxu0
    %425 = vmatprep.mubr.f32.mxu0 0.0
    %426 = vmatmul.mubr.f32.gmra.mrb[0].mxu0 %v288
    %v427 = vpop.f32.mrb[0].mxu0
    %v428 = vadd.f32 %v235, %v427
    %v429 = vpop.f32.mrb[0].mxu0
    %430 = vmatprep.mubr.f32.mxu0 0.0
    %431 = vmatmul.mubr.f32.gmra.mrb[0].mxu0 %v291
    %v432 = vpop.f32.mrb[0].mxu0
    %v433 = vadd.f32 %v240, %v432
    %v434 = vpop.f32.mrb[0].mxu0
    %435 = vmatprep.mubr.f32.mxu0 0.0
    %436 = vmatmul.mubr.f32.gmra.mrb[0].mxu0 %v294
    %v437 = vpop.f32.mrb[0].mxu0
    %v438 = vadd.f32 %v245, %v437
    %v439 = vpop.f32.mrb[0].mxu0
    %440 = vdwg.mxu0
    %v441 = vld [vmem:[#allocation2] sm:$0x3]
    %v442 = vld [vmem:[%s0] sm:$0xff]
    %v443 = vld [vmem:[#allocation9] sm:$0xff]
    %v444 = vld [vmem:[#allocation9 + $0x8] sm:$0xff]
    %v445 = vld [vmem:[#allocation9 + $0x10] sm:$0xff]
    %v446 = vld [vmem:[#allocation9 + $0x18] sm:$0xff]
    %v447 = vld [vmem:[#allocation7] sm:$0xff]
    %v448 = vld [vmem:[#allocation7 + $0x8] sm:$0xff]
    %v449 = vld [vmem:[#allocation7 + $0x10] sm:$0xff]
    %v450 = vld [vmem:[#allocation7 + $0x18] sm:$0xff]
    %vm451 = vcmask 64512
    %v453 = vsel %vm451, %v447, 0
    %v456 = vsel %vm451, %v448, 0
    %v459 = vsel %vm451, %v449, 0
    %v462 = vsel %vm451, %v450, 0
    %464 = vmatprep.subr.mxu0 0.0
    %465 = vmatpush1.msra.mxu0 %v442
    %466 = vmatprep.subr.mxu0 0.0
    %467 = vmatpush1.msra.mxu0 0.0
    %468 = vmatprep.subr.mxu0 0.0
    %469 = vmatpush1.msra.mxu0 0.0
    %470 = vmatprep.subr.mxu0 0.0
    %471 = vmatpush1.msra.mxu0 0.0
    %472 = vmatprep.subr.mxu0 0.0
    %473 = vmatpush1.msra.mxu0 0.0
    %474 = vmatprep.subr.mxu0 0.0
    %475 = vmatpush1.msra.mxu0 0.0
    %476 = vmatprep.subr.mxu0 0.0
    %477 = vmatpush1.msra.mxu0 0.0
    %478 = vmatprep.subr.mxu0 0.0
    %479 = vmatpush1.msra.mxu0 0.0
    %480 = vmatprep.subr.mxu0 0.0
    %481 = vmatpush1.msra.mxu0 0.0
    %482 = vmatprep.subr.mxu0 0.0
    %483 = vmatpush1.msra.mxu0 0.0
    %484 = vmatprep.subr.mxu0 0.0
    %485 = vmatpush1.msra.mxu0 0.0
    %486 = vmatprep.subr.mxu0 0.0
    %487 = vmatpush1.msra.mxu0 0.0
    %488 = vmatprep.subr.mxu0 0.0
    %489 = vmatpush1.msra.mxu0 0.0
    %490 = vmatprep.subr.mxu0 0.0
    %491 = vmatpush1.msra.mxu0 0.0
    %492 = vmatprep.subr.mxu0 0.0
    %493 = vmatpush1.msra.mxu0 0.0
    %494 = vmatprep.subr.mxu0 0.0
    %495 = vmatpush1.msra.mxu0 0.0
    %496 = vmatprep.subr.mxu0 0.0
    %497 = vmatpush1.msra.mxu0 0.0
    %498 = vmatprep.subr.mxu0 0.0
    %499 = vmatpush1.msra.mxu0 0.0
    %500 = vmatprep.subr.mxu0 0.0
    %501 = vmatpush1.msra.mxu0 0.0
    %502 = vmatprep.subr.mxu0 0.0
    %503 = vmatpush1.msra.mxu0 0.0
    %504 = vmatprep.subr.mxu0 0.0
    %505 = vmatpush1.msra.mxu0 0.0
    %506 = vmatprep.subr.mxu0 0.0
    %507 = vmatpush1.msra.mxu0 0.0
    %508 = vmatprep.subr.mxu0 0.0
    %509 = vmatpush1.msra.mxu0 0.0
    %510 = vmatprep.subr.mxu0 0.0
    %511 = vmatpush1.msra.mxu0 0.0
    %512 = vmatprep.subr.mxu0 0.0
    %513 = vmatpush1.msra.mxu0 0.0
    %514 = vmatprep.subr.mxu0 0.0
    %515 = vmatpush1.msra.mxu0 0.0
    %516 = vmatprep.subr.mxu0 0.0
    %517 = vmatpush1.msra.mxu0 0.0
    %518 = vmatprep.subr.mxu0 0.0
    %519 = vmatpush1.msra.mxu0 0.0
    %520 = vmatprep.subr.mxu0 0.0
    %521 = vmatpush1.msra.mxu0 0.0
    %522 = vmatprep.subr.mxu0 0.0
    %523 = vmatpush1.msra.mxu0 0.0
    %524 = vmatprep.subr.mxu0 0.0
    %525 = vmatpush1.msra.mxu0 0.0
    %526 = vmatprep.subr.mxu0 0.0
    %527 = vmatpush1.msra.mxu0 0.0
    %528 = vmatprep.mubr.f32.mxu0 0.0
    %529 = vmatmul.mubr.f32.gmra.mrb[0].mxu0 %v453
    %v530 = vpop.f32.mrb[0].mxu0
    %v531 = vadd.f32 0.0, %v530
    %v532 = vpop.f32.mrb[0].mxu0
    %533 = vmatprep.mubr.f32.mxu0 0.0
    %534 = vmatmul.mubr.f32.gmra.mrb[0].mxu0 %v456
    %v535 = vpop.f32.mrb[0].mxu0
    %v536 = vadd.f32 0.0, %v535
    %v537 = vpop.f32.mrb[0].mxu0
    %538 = vmatprep.mubr.f32.mxu0 0.0
    %539 = vmatmul.mubr.f32.gmra.mrb[0].mxu0 %v459
    %v540 = vpop.f32.mrb[0].mxu0
    %v541 = vadd.f32 0.0, %v540
    %v542 = vpop.f32.mrb[0].mxu0
    %543 = vmatprep.mubr.f32.mxu0 0.0
    %544 = vmatmul.mubr.f32.gmra.mrb[0].mxu0 %v462
    %v545 = vpop.f32.mrb[0].mxu0
    %v546 = vadd.f32 0.0, %v545
    %v547 = vpop.f32.mrb[0].mxu0
    %548 = vdwg.mxu0
    %550 = vset.pattern.permute.xlu0 0
    %551 = vperm.xlu0 %550, %v443
    %v552 = vpop.permute.xlu0 %551
    %555 = vset.pattern.permute.xlu0 0
    %556 = vperm.xlu0 %555, %v444
    %v557 = vpop.permute.xlu0 %556
    %560 = vset.pattern.permute.xlu0 0
    %561 = vperm.xlu0 %560, %v445
    %v562 = vpop.permute.xlu0 %561
    %565 = vset.pattern.permute.xlu0 0
    %566 = vperm.xlu0 %565, %v446
    %v567 = vpop.permute.xlu0 %566
    %v569 = vadd.f32 %v552, %v531
    %v570 = vadd.f32 %v557, %v536
    %v571 = vadd.f32 %v562, %v541
    %v572 = vadd.f32 %v567, %v546
    %s573 = scalar_lea.vmem [#allocation7], 32
    %v574 = vld [vmem:[%s573] sm:$0xff]
    %v575 = vld [vmem:[%s573 + $0x8] sm:$0xff]
    %v576 = vld [vmem:[%s573 + $0x10] sm:$0xff]
    %v577 = vld [vmem:[%s573 + $0x18] sm:$0xff]
    %579 = vrot.lane.b32.xlu0 %v442, 127
    %v580 = vpop.permute.xlu0 %579
    %v583 = vsel %vm451, %v574, 0
    %v586 = vsel %vm451, %v575, 0
    %v589 = vsel %vm451, %v576, 0
    %v592 = vsel %vm451, %v577, 0
    %594 = vmatprep.subr.mxu0 0.0
    %595 = vmatpush1.msra.mxu0 %v580
    %596 = vmatprep.subr.mxu0 0.0
    %597 = vmatpush1.msra.mxu0 0.0
    %598 = vmatprep.subr.mxu0 0.0
    %599 = vmatpush1.msra.mxu0 0.0
    %600 = vmatprep.subr.mxu0 0.0
    %601 = vmatpush1.msra.mxu0 0.0
    %602 = vmatprep.subr.mxu0 0.0
    %603 = vmatpush1.msra.mxu0 0.0
    %604 = vmatprep.subr.mxu0 0.0
    %605 = vmatpush1.msra.mxu0 0.0
    %606 = vmatprep.subr.mxu0 0.0
    %607 = vmatpush1.msra.mxu0 0.0
    %608 = vmatprep.subr.mxu0 0.0
    %609 = vmatpush1.msra.mxu0 0.0
    %610 = vmatprep.subr.mxu0 0.0
    %611 = vmatpush1.msra.mxu0 0.0
    %612 = vmatprep.subr.mxu0 0.0
    %613 = vmatpush1.msra.mxu0 0.0
    %614 = vmatprep.subr.mxu0 0.0
    %615 = vmatpush1.msra.mxu0 0.0
    %616 = vmatprep.subr.mxu0 0.0
    %617 = vmatpush1.msra.mxu0 0.0
    %618 = vmatprep.subr.mxu0 0.0
    %619 = vmatpush1.msra.mxu0 0.0
    %620 = vmatprep.subr.mxu0 0.0
    %621 = vmatpush1.msra.mxu0 0.0
    %622 = vmatprep.subr.mxu0 0.0
    %623 = vmatpush1.msra.mxu0 0.0
    %624 = vmatprep.subr.mxu0 0.0
    %625 = vmatpush1.msra.mxu0 0.0
    %626 = vmatprep.subr.mxu0 0.0
    %627 = vmatpush1.msra.mxu0 0.0
    %628 = vmatprep.subr.mxu0 0.0
    %629 = vmatpush1.msra.mxu0 0.0
    %630 = vmatprep.subr.mxu0 0.0
    %631 = vmatpush1.msra.mxu0 0.0
    %632 = vmatprep.subr.mxu0 0.0
    %633 = vmatpush1.msra.mxu0 0.0
    %634 = vmatprep.subr.mxu0 0.0
    %635 = vmatpush1.msra.mxu0 0.0
    %636 = vmatprep.subr.mxu0 0.0
    %637 = vmatpush1.msra.mxu0 0.0
    %638 = vmatprep.subr.mxu0 0.0
    %639 = vmatpush1.msra.mxu0 0.0
    %640 = vmatprep.subr.mxu0 0.0
    %641 = vmatpush1.msra.mxu0 0.0
    %642 = vmatprep.subr.mxu0 0.0
    %643 = vmatpush1.msra.mxu0 0.0
    %644 = vmatprep.subr.mxu0 0.0
    %645 = vmatpush1.msra.mxu0 0.0
    %646 = vmatprep.subr.mxu0 0.0
    %647 = vmatpush1.msra.mxu0 0.0
    %648 = vmatprep.subr.mxu0 0.0
    %649 = vmatpush1.msra.mxu0 0.0
    %650 = vmatprep.subr.mxu0 0.0
    %651 = vmatpush1.msra.mxu0 0.0
    %652 = vmatprep.subr.mxu0 0.0
    %653 = vmatpush1.msra.mxu0 0.0
    %654 = vmatprep.subr.mxu0 0.0
    %655 = vmatpush1.msra.mxu0 0.0
    %656 = vmatprep.subr.mxu0 0.0
    %657 = vmatpush1.msra.mxu0 0.0
    %658 = vmatprep.mubr.f32.mxu0 0.0
    %659 = vmatmul.mubr.f32.gmra.mrb[0].mxu0 %v583
    %v660 = vpop.f32.mrb[0].mxu0
    %v661 = vadd.f32 0.0, %v660
    %v662 = vpop.f32.mrb[0].mxu0
    %663 = vmatprep.mubr.f32.mxu0 0.0
    %664 = vmatmul.mubr.f32.gmra.mrb[0].mxu0 %v586
    %v665 = vpop.f32.mrb[0].mxu0
    %v666 = vadd.f32 0.0, %v665
    %v667 = vpop.f32.mrb[0].mxu0
    %668 = vmatprep.mubr.f32.mxu0 0.0
    %669 = vmatmul.mubr.f32.gmra.mrb[0].mxu0 %v589
    %v670 = vpop.f32.mrb[0].mxu0
    %v671 = vadd.f32 0.0, %v670
    %v672 = vpop.f32.mrb[0].mxu0
    %673 = vmatprep.mubr.f32.mxu0 0.0
    %674 = vmatmul.mubr.f32.gmra.mrb[0].mxu0 %v592
    %v675 = vpop.f32.mrb[0].mxu0
    %v676 = vadd.f32 0.0, %v675
    %v677 = vpop.f32.mrb[0].mxu0
    %678 = vdwg.mxu0
    %v679 = vadd.f32 %v569, %v661
    %v680 = vadd.f32 %v570, %v666
    %v681 = vadd.f32 %v571, %v671
    %v682 = vadd.f32 %v572, %v676
    %s683 = scalar_lea.vmem [#allocation7], 64
    %v684 = vld [vmem:[%s683] sm:$0xff]
    %v685 = vld [vmem:[%s683 + $0x8] sm:$0xff]
    %v686 = vld [vmem:[%s683 + $0x10] sm:$0xff]
    %v687 = vld [vmem:[%s683 + $0x18] sm:$0xff]
    %688 = vrot.lane.b32.xlu0 %v442, 126
    %v689 = vpop.permute.xlu0 %688
    %v692 = vsel %vm451, %v684, 0
    %v695 = vsel %vm451, %v685, 0
    %v698 = vsel %vm451, %v686, 0
    %v701 = vsel %vm451, %v687, 0
    %703 = vmatprep.subr.mxu0 0.0
    %704 = vmatpush1.msra.mxu0 %v689
    %705 = vmatprep.subr.mxu0 0.0
    %706 = vmatpush1.msra.mxu0 0.0
    %707 = vmatprep.subr.mxu0 0.0
    %708 = vmatpush1.msra.mxu0 0.0
    %709 = vmatprep.subr.mxu0 0.0
    %710 = vmatpush1.msra.mxu0 0.0
    %711 = vmatprep.subr.mxu0 0.0
    %712 = vmatpush1.msra.mxu0 0.0
    %713 = vmatprep.subr.mxu0 0.0
    %714 = vmatpush1.msra.mxu0 0.0
    %715 = vmatprep.subr.mxu0 0.0
    %716 = vmatpush1.msra.mxu0 0.0
    %717 = vmatprep.subr.mxu0 0.0
    %718 = vmatpush1.msra.mxu0 0.0
    %719 = vmatprep.subr.mxu0 0.0
    %720 = vmatpush1.msra.mxu0 0.0
    %721 = vmatprep.subr.mxu0 0.0
    %722 = vmatpush1.msra.mxu0 0.0
    %723 = vmatprep.subr.mxu0 0.0
    %724 = vmatpush1.msra.mxu0 0.0
    %725 = vmatprep.subr.mxu0 0.0
    %726 = vmatpush1.msra.mxu0 0.0
    %727 = vmatprep.subr.mxu0 0.0
    %728 = vmatpush1.msra.mxu0 0.0
    %729 = vmatprep.subr.mxu0 0.0
    %730 = vmatpush1.msra.mxu0 0.0
    %731 = vmatprep.subr.mxu0 0.0
    %732 = vmatpush1.msra.mxu0 0.0
    %733 = vmatprep.subr.mxu0 0.0
    %734 = vmatpush1.msra.mxu0 0.0
    %735 = vmatprep.subr.mxu0 0.0
    %736 = vmatpush1.msra.mxu0 0.0
    %737 = vmatprep.subr.mxu0 0.0
    %738 = vmatpush1.msra.mxu0 0.0
    %739 = vmatprep.subr.mxu0 0.0
    %740 = vmatpush1.msra.mxu0 0.0
    %741 = vmatprep.subr.mxu0 0.0
    %742 = vmatpush1.msra.mxu0 0.0
    %743 = vmatprep.subr.mxu0 0.0
    %744 = vmatpush1.msra.mxu0 0.0
    %745 = vmatprep.subr.mxu0 0.0
    %746 = vmatpush1.msra.mxu0 0.0
    %747 = vmatprep.subr.mxu0 0.0
    %748 = vmatpush1.msra.mxu0 0.0
    %749 = vmatprep.subr.mxu0 0.0
    %750 = vmatpush1.msra.mxu0 0.0
    %751 = vmatprep.subr.mxu0 0.0
    %752 = vmatpush1.msra.mxu0 0.0
    %753 = vmatprep.subr.mxu0 0.0
    %754 = vmatpush1.msra.mxu0 0.0
    %755 = vmatprep.subr.mxu0 0.0
    %756 = vmatpush1.msra.mxu0 0.0
    %757 = vmatprep.subr.mxu0 0.0
    %758 = vmatpush1.msra.mxu0 0.0
    %759 = vmatprep.subr.mxu0 0.0
    %760 = vmatpush1.msra.mxu0 0.0
    %761 = vmatprep.subr.mxu0 0.0
    %762 = vmatpush1.msra.mxu0 0.0
    %763 = vmatprep.subr.mxu0 0.0
    %764 = vmatpush1.msra.mxu0 0.0
    %765 = vmatprep.subr.mxu0 0.0
    %766 = vmatpush1.msra.mxu0 0.0
    %767 = vmatprep.mubr.f32.mxu0 0.0
    %768 = vmatmul.mubr.f32.gmra.mrb[0].mxu0 %v692
    %v769 = vpop.f32.mrb[0].mxu0
    %v770 = vadd.f32 0.0, %v769
    %v771 = vpop.f32.mrb[0].mxu0
    %772 = vmatprep.mubr.f32.mxu0 0.0
    %773 = vmatmul.mubr.f32.gmra.mrb[0].mxu0 %v695
    %v774 = vpop.f32.mrb[0].mxu0
    %v775 = vadd.f32 0.0, %v774
    %v776 = vpop.f32.mrb[0].mxu0
    %777 = vmatprep.mubr.f32.mxu0 0.0
    %778 = vmatmul.mubr.f32.gmra.mrb[0].mxu0 %v698
    %v779 = vpop.f32.mrb[0].mxu0
    %v780 = vadd.f32 0.0, %v779
    %v781 = vpop.f32.mrb[0].mxu0
    %782 = vmatprep.mubr.f32.mxu0 0.0
    %783 = vmatmul.mubr.f32.gmra.mrb[0].mxu0 %v701
    %v784 = vpop.f32.mrb[0].mxu0
    %v785 = vadd.f32 0.0, %v784
    %v786 = vpop.f32.mrb[0].mxu0
    %787 = vdwg.mxu0
    %v788 = vadd.f32 %v679, %v770
    %v789 = vadd.f32 %v680, %v775
    %v790 = vadd.f32 %v681, %v780
    %v791 = vadd.f32 %v682, %v785
    %s792 = scalar_lea.vmem [#allocation7], 96
    %v793 = vld [vmem:[%s792] sm:$0xff]
    %v794 = vld [vmem:[%s792 + $0x8] sm:$0xff]
    %v795 = vld [vmem:[%s792 + $0x10] sm:$0xff]
    %v796 = vld [vmem:[%s792 + $0x18] sm:$0xff]
    %797 = vrot.lane.b32.xlu0 %v442, 125
    %v798 = vpop.permute.xlu0 %797
    %v801 = vsel %vm451, %v793, 0
    %v804 = vsel %vm451, %v794, 0
    %v807 = vsel %vm451, %v795, 0
    %v810 = vsel %vm451, %v796, 0
    %812 = vmatprep.subr.mxu0 0.0
    %813 = vmatpush1.msra.mxu0 %v798
    %814 = vmatprep.subr.mxu0 0.0
    %815 = vmatpush1.msra.mxu0 0.0
    %816 = vmatprep.subr.mxu0 0.0
    %817 = vmatpush1.msra.mxu0 0.0
    %818 = vmatprep.subr.mxu0 0.0
    %819 = vmatpush1.msra.mxu0 0.0
    %820 = vmatprep.subr.mxu0 0.0
    %821 = vmatpush1.msra.mxu0 0.0
    %822 = vmatprep.subr.mxu0 0.0
    %823 = vmatpush1.msra.mxu0 0.0
    %824 = vmatprep.subr.mxu0 0.0
    %825 = vmatpush1.msra.mxu0 0.0
    %826 = vmatprep.subr.mxu0 0.0
    %827 = vmatpush1.msra.mxu0 0.0
    %828 = vmatprep.subr.mxu0 0.0
    %829 = vmatpush1.msra.mxu0 0.0
    %830 = vmatprep.subr.mxu0 0.0
    %831 = vmatpush1.msra.mxu0 0.0
    %832 = vmatprep.subr.mxu0 0.0
    %833 = vmatpush1.msra.mxu0 0.0
    %834 = vmatprep.subr.mxu0 0.0
    %835 = vmatpush1.msra.mxu0 0.0
    %836 = vmatprep.subr.mxu0 0.0
    %837 = vmatpush1.msra.mxu0 0.0
    %838 = vmatprep.subr.mxu0 0.0
    %839 = vmatpush1.msra.mxu0 0.0
    %840 = vmatprep.subr.mxu0 0.0
    %841 = vmatpush1.msra.mxu0 0.0
    %842 = vmatprep.subr.mxu0 0.0
    %843 = vmatpush1.msra.mxu0 0.0
    %844 = vmatprep.subr.mxu0 0.0
    %845 = vmatpush1.msra.mxu0 0.0
    %846 = vmatprep.subr.mxu0 0.0
    %847 = vmatpush1.msra.mxu0 0.0
    %848 = vmatprep.subr.mxu0 0.0
    %849 = vmatpush1.msra.mxu0 0.0
    %850 = vmatprep.subr.mxu0 0.0
    %851 = vmatpush1.msra.mxu0 0.0
    %852 = vmatprep.subr.mxu0 0.0
    %853 = vmatpush1.msra.mxu0 0.0
    %854 = vmatprep.subr.mxu0 0.0
    %855 = vmatpush1.msra.mxu0 0.0
    %856 = vmatprep.subr.mxu0 0.0
    %857 = vmatpush1.msra.mxu0 0.0
    %858 = vmatprep.subr.mxu0 0.0
    %859 = vmatpush1.msra.mxu0 0.0
    %860 = vmatprep.subr.mxu0 0.0
    %861 = vmatpush1.msra.mxu0 0.0
    %862 = vmatprep.subr.mxu0 0.0
    %863 = vmatpush1.msra.mxu0 0.0
    %864 = vmatprep.subr.mxu0 0.0
    %865 = vmatpush1.msra.mxu0 0.0
    %866 = vmatprep.subr.mxu0 0.0
    %867 = vmatpush1.msra.mxu0 0.0
    %868 = vmatprep.subr.mxu0 0.0
    %869 = vmatpush1.msra.mxu0 0.0
    %870 = vmatprep.subr.mxu0 0.0
    %871 = vmatpush1.msra.mxu0 0.0
    %872 = vmatprep.subr.mxu0 0.0
    %873 = vmatpush1.msra.mxu0 0.0
    %874 = vmatprep.subr.mxu0 0.0
    %875 = vmatpush1.msra.mxu0 0.0
    %876 = vmatprep.mubr.f32.mxu0 0.0
    %877 = vmatmul.mubr.f32.gmra.mrb[0].mxu0 %v801
    %v878 = vpop.f32.mrb[0].mxu0
    %v879 = vadd.f32 0.0, %v878
    %v880 = vpop.f32.mrb[0].mxu0
    %881 = vmatprep.mubr.f32.mxu0 0.0
    %882 = vmatmul.mubr.f32.gmra.mrb[0].mxu0 %v804
    %v883 = vpop.f32.mrb[0].mxu0
    %v884 = vadd.f32 0.0, %v883
    %v885 = vpop.f32.mrb[0].mxu0
    %886 = vmatprep.mubr.f32.mxu0 0.0
    %887 = vmatmul.mubr.f32.gmra.mrb[0].mxu0 %v807
    %v888 = vpop.f32.mrb[0].mxu0
    %v889 = vadd.f32 0.0, %v888
    %v890 = vpop.f32.mrb[0].mxu0
    %891 = vmatprep.mubr.f32.mxu0 0.0
    %892 = vmatmul.mubr.f32.gmra.mrb[0].mxu0 %v810
    %v893 = vpop.f32.mrb[0].mxu0
    %v894 = vadd.f32 0.0, %v893
    %v895 = vpop.f32.mrb[0].mxu0
    %896 = vdwg.mxu0
    %v897 = vadd.f32 %v788, %v879
    %v898 = vadd.f32 %v789, %v884
    %v899 = vadd.f32 %v790, %v889
    %v900 = vadd.f32 %v791, %v894
    %s901 = scalar_lea.vmem [#allocation7], 128
    %v902 = vld [vmem:[%s901] sm:$0xff]
    %v903 = vld [vmem:[%s901 + $0x8] sm:$0xff]
    %v904 = vld [vmem:[%s901 + $0x10] sm:$0xff]
    %v905 = vld [vmem:[%s901 + $0x18] sm:$0xff]
    %906 = vrot.lane.b32.xlu0 %v442, 124
    %v907 = vpop.permute.xlu0 %906
    %v910 = vsel %vm451, %v902, 0
    %v913 = vsel %vm451, %v903, 0
    %v916 = vsel %vm451, %v904, 0
    %v919 = vsel %vm451, %v905, 0
    %921 = vmatprep.subr.mxu0 0.0
    %922 = vmatpush1.msra.mxu0 %v907
    %923 = vmatprep.subr.mxu0 0.0
    %924 = vmatpush1.msra.mxu0 0.0
    %925 = vmatprep.subr.mxu0 0.0
    %926 = vmatpush1.msra.mxu0 0.0
    %927 = vmatprep.subr.mxu0 0.0
    %928 = vmatpush1.msra.mxu0 0.0
    %929 = vmatprep.subr.mxu0 0.0
    %930 = vmatpush1.msra.mxu0 0.0
    %931 = vmatprep.subr.mxu0 0.0
    %932 = vmatpush1.msra.mxu0 0.0
    %933 = vmatprep.subr.mxu0 0.0
    %934 = vmatpush1.msra.mxu0 0.0
    %935 = vmatprep.subr.mxu0 0.0
    %936 = vmatpush1.msra.mxu0 0.0
    %937 = vmatprep.subr.mxu0 0.0
    %938 = vmatpush1.msra.mxu0 0.0
    %939 = vmatprep.subr.mxu0 0.0
    %940 = vmatpush1.msra.mxu0 0.0
    %941 = vmatprep.subr.mxu0 0.0
    %942 = vmatpush1.msra.mxu0 0.0
    %943 = vmatprep.subr.mxu0 0.0
    %944 = vmatpush1.msra.mxu0 0.0
    %945 = vmatprep.subr.mxu0 0.0
    %946 = vmatpush1.msra.mxu0 0.0
    %947 = vmatprep.subr.mxu0 0.0
    %948 = vmatpush1.msra.mxu0 0.0
    %949 = vmatprep.subr.mxu0 0.0
    %950 = vmatpush1.msra.mxu0 0.0
    %951 = vmatprep.subr.mxu0 0.0
    %952 = vmatpush1.msra.mxu0 0.0
    %953 = vmatprep.subr.mxu0 0.0
    %954 = vmatpush1.msra.mxu0 0.0
    %955 = vmatprep.subr.mxu0 0.0
    %956 = vmatpush1.msra.mxu0 0.0
    %957 = vmatprep.subr.mxu0 0.0
    %958 = vmatpush1.msra.mxu0 0.0
    %959 = vmatprep.subr.mxu0 0.0
    %960 = vmatpush1.msra.mxu0 0.0
    %961 = vmatprep.subr.mxu0 0.0
    %962 = vmatpush1.msra.mxu0 0.0
    %963 = vmatprep.subr.mxu0 0.0
    %964 = vmatpush1.msra.mxu0 0.0
    %965 = vmatprep.subr.mxu0 0.0
    %966 = vmatpush1.msra.mxu0 0.0
    %967 = vmatprep.subr.mxu0 0.0
    %968 = vmatpush1.msra.mxu0 0.0
    %969 = vmatprep.subr.mxu0 0.0
    %970 = vmatpush1.msra.mxu0 0.0
    %971 = vmatprep.subr.mxu0 0.0
    %972 = vmatpush1.msra.mxu0 0.0
    %973 = vmatprep.subr.mxu0 0.0
    %974 = vmatpush1.msra.mxu0 0.0
    %975 = vmatprep.subr.mxu0 0.0
    %976 = vmatpush1.msra.mxu0 0.0
    %977 = vmatprep.subr.mxu0 0.0
    %978 = vmatpush1.msra.mxu0 0.0
    %979 = vmatprep.subr.mxu0 0.0
    %980 = vmatpush1.msra.mxu0 0.0
    %981 = vmatprep.subr.mxu0 0.0
    %982 = vmatpush1.msra.mxu0 0.0
    %983 = vmatprep.subr.mxu0 0.0
    %984 = vmatpush1.msra.mxu0 0.0
    %985 = vmatprep.mubr.f32.mxu0 0.0
    %986 = vmatmul.mubr.f32.gmra.mrb[0].mxu0 %v910
    %v987 = vpop.f32.mrb[0].mxu0
    %v988 = vadd.f32 0.0, %v987
    %v989 = vpop.f32.mrb[0].mxu0
    %990 = vmatprep.mubr.f32.mxu0 0.0
    %991 = vmatmul.mubr.f32.gmra.mrb[0].mxu0 %v913
    %v992 = vpop.f32.mrb[0].mxu0
    %v993 = vadd.f32 0.0, %v992
    %v994 = vpop.f32.mrb[0].mxu0
    %995 = vmatprep.mubr.f32.mxu0 0.0
    %996 = vmatmul.mubr.f32.gmra.mrb[0].mxu0 %v916
    %v997 = vpop.f32.mrb[0].mxu0
    %v998 = vadd.f32 0.0, %v997
    %v999 = vpop.f32.mrb[0].mxu0
    %1000 = vmatprep.mubr.f32.mxu0 0.0
    %1001 = vmatmul.mubr.f32.gmra.mrb[0].mxu0 %v919
    %v1002 = vpop.f32.mrb[0].mxu0
    %v1003 = vadd.f32 0.0, %v1002
    %v1004 = vpop.f32.mrb[0].mxu0
    %1005 = vdwg.mxu0
    %v1006 = vadd.f32 %v897, %v988
    %v1007 = vadd.f32 %v898, %v993
    %v1008 = vadd.f32 %v899, %v998
    %v1009 = vadd.f32 %v900, %v1003
    %1011 = vset.pattern.permute.xlu0 0
    %1012 = vperm.xlu0 %1011, %v363
    %v1013 = vpop.permute.xlu0 %1012
    %1016 = vset.pattern.permute.xlu0 0
    %1017 = vperm.xlu0 %1016, %v368
    %v1018 = vpop.permute.xlu0 %1017
    %1021 = vset.pattern.permute.xlu0 0
    %1022 = vperm.xlu0 %1021, %v373
    %v1023 = vpop.permute.xlu0 %1022
    %1026 = vset.pattern.permute.xlu0 0
    %1027 = vperm.xlu0 %1026, %v378
    %v1028 = vpop.permute.xlu0 %1027
    %v1030 = vlaneseq
    %v1031 = vshrl.u32 %v1030, 7
    %v1032 = vsub.s32 0, %v1031
    %v1033 = vrot.slane %v441, %v1032
    %v1034 = vmul.f32 %v1013, %v1033
    %v1035 = vmul.f32 %v1018, %v1033
    %v1036 = vmul.f32 %v1023, %v1033
    %v1037 = vmul.f32 %v1028, %v1033
    %1039 = vset.pattern.permute.xlu0 0
    %1040 = vperm.xlu0 %1039, %v383
    %v1041 = vpop.permute.xlu0 %1040
    %1044 = vset.pattern.permute.xlu0 0
    %1045 = vperm.xlu0 %1044, %v388
    %v1046 = vpop.permute.xlu0 %1045
    %1049 = vset.pattern.permute.xlu0 0
    %1050 = vperm.xlu0 %1049, %v393
    %v1051 = vpop.permute.xlu0 %1050
    %1054 = vset.pattern.permute.xlu0 0
    %1055 = vperm.xlu0 %1054, %v398
    %v1056 = vpop.permute.xlu0 %1055
    %v1058 = vmul.f32 %v1041, %v1033
    %v1059 = vmul.f32 %v1046, %v1033
    %v1060 = vmul.f32 %v1051, %v1033
    %v1061 = vmul.f32 %v1056, %v1033
    %1062 = vset.pattern.permute.xlu0 1
    %1063 = vperm.xlu0 %1062, %v363
    %v1064 = vpop.permute.xlu0 %1063
    %1066 = vset.pattern.permute.xlu0 1
    %1067 = vperm.xlu0 %1066, %v368
    %v1068 = vpop.permute.xlu0 %1067
    %1070 = vset.pattern.permute.xlu0 1
    %1071 = vperm.xlu0 %1070, %v373
    %v1072 = vpop.permute.xlu0 %1071
    %1074 = vset.pattern.permute.xlu0 1
    %1075 = vperm.xlu0 %1074, %v378
    %v1076 = vpop.permute.xlu0 %1075
    %v1078 = vlaneseq
    %v1079 = vshrl.u32 %v1078, 7
    %v1080 = vsub.s32 1, %v1079
    %v1081 = vrot.slane %v441, %v1080
    %v1082 = vmul.f32 %v1064, %v1081
    %v1083 = vmul.f32 %v1068, %v1081
    %v1084 = vmul.f32 %v1072, %v1081
    %v1085 = vmul.f32 %v1076, %v1081
    %1086 = vset.pattern.permute.xlu0 1
    %1087 = vperm.xlu0 %1086, %v383
    %v1088 = vpop.permute.xlu0 %1087
    %1090 = vset.pattern.permute.xlu0 1
    %1091 = vperm.xlu0 %1090, %v388
    %v1092 = vpop.permute.xlu0 %1091
    %1094 = vset.pattern.permute.xlu0 1
    %1095 = vperm.xlu0 %1094, %v393
    %v1096 = vpop.permute.xlu0 %1095
    %1098 = vset.pattern.permute.xlu0 1
    %1099 = vperm.xlu0 %1098, %v398
    %v1100 = vpop.permute.xlu0 %1099
    %v1102 = vmul.f32 %v1088, %v1081
    %v1103 = vmul.f32 %v1092, %v1081
    %v1104 = vmul.f32 %v1096, %v1081
    %v1105 = vmul.f32 %v1100, %v1081
    %v1106 = vadd.f32 %v1034, %v1082
    %v1107 = vadd.f32 %v1035, %v1083
    %v1108 = vadd.f32 %v1036, %v1084
    %v1109 = vadd.f32 %v1037, %v1085
    %v1110 = vadd.f32 %v1058, %v1102
    %v1111 = vadd.f32 %v1059, %v1103
    %v1112 = vadd.f32 %v1060, %v1104
    %v1113 = vadd.f32 %v1061, %v1105
    %v1114 = vmax.f32 %v1006, 0.0
    %v1115 = vmax.f32 %v1007, 0.0
    %v1116 = vmax.f32 %v1008, 0.0
    %v1117 = vmax.f32 %v1009, 0.0
    %1122 = vrot.lane.b32.xlu0 %v1106, 126
    %v1123 = vpop.permute.xlu0 %1122
    %1124 = vrot.lane.b32.xlu0 %v1107, 126
    %v1125 = vpop.permute.xlu0 %1124
    %1126 = vrot.lane.b32.xlu0 %v1108, 126
    %v1127 = vpop.permute.xlu0 %1126
    %1128 = vrot.lane.b32.xlu0 %v1109, 126
    %v1129 = vpop.permute.xlu0 %1128
    %v1134 = vmul.f32 %v1114, %v1123
    %v1135 = vmul.f32 %v1115, %v1125
    %v1136 = vmul.f32 %v1116, %v1127
    %v1137 = vmul.f32 %v1117, %v1129
    %1142 = vrot.lane.b32.xlu0 %v1110, 126
    %v1143 = vpop.permute.xlu0 %1142
    %1144 = vrot.lane.b32.xlu0 %v1111, 126
    %v1145 = vpop.permute.xlu0 %1144
    %1146 = vrot.lane.b32.xlu0 %v1112, 126
    %v1147 = vpop.permute.xlu0 %1146
    %1148 = vrot.lane.b32.xlu0 %v1113, 126
    %v1149 = vpop.permute.xlu0 %1148
    %v1154 = vadd.f32 %v1134, %v1143
    %v1155 = vadd.f32 %v1135, %v1145
    %v1156 = vadd.f32 %v1136, %v1147
    %v1157 = vadd.f32 %v1137, %v1149
    %1162 = vrot.lane.b32.xlu0 %v1154, 2
    %v1163 = vpop.permute.xlu0 %1162
    %1164 = vrot.lane.b32.xlu0 %v1155, 2
    %v1165 = vpop.permute.xlu0 %1164
    %1166 = vrot.lane.b32.xlu0 %v1156, 2
    %v1167 = vpop.permute.xlu0 %1166
    %1168 = vrot.lane.b32.xlu0 %v1157, 2
    %v1169 = vpop.permute.xlu0 %1168
    %vm1174 = vcmask 15360
    %v1175 = vsel %vm1174, 0.0, %v1163
    %v1176 = vsel %vm1174, 0.0, %v1165
    %v1177 = vsel %vm1174, 0.0, %v1167
    %v1178 = vsel %vm1174, 0.0, %v1169
    %vm1179 = vcmask 1031168
    %v1180 = vsel %vm1179, %v1175, 0.0
    %v1181 = vsel %vm1179, %v1176, 0.0
    %v1182 = vsel %vm1179, %v1177, 0.0
    %v1183 = vsel %vm1179, %v1178, 0.0
    %v1184 = vld [vmem:[#allocation10] sm:$0xff]
    %v1185 = vld [vmem:[#allocation10 + $0x8] sm:$0xff]
    %v1186 = vld [vmem:[#allocation10 + $0x10] sm:$0xff]
    %v1187 = vld [vmem:[#allocation10 + $0x18] sm:$0xff]
    %v1188 = vld [vmem:[%s7] sm:$0xff]
    %v1189 = vld [vmem:[%s7 + $0x8] sm:$0xff]
    %v1190 = vld [vmem:[%s7 + $0x10] sm:$0xff]
    %v1191 = vld [vmem:[%s7 + $0x18] sm:$0xff]
    %v1193 = vsel %vm247, %v1188, 0
    %v1196 = vsel %vm247, %v1189, 0
    %v1199 = vsel %vm247, %v1190, 0
    %v1202 = vsel %vm247, %v1191, 0
    %1204 = vmatprep.subr.mxu0 0.0
    %1205 = vmatpush1.msra.mxu0 %v1180
    %1206 = vmatprep.subr.mxu0 0.0
    %1207 = vmatpush1.msra.mxu0 %v1181
    %1208 = vmatprep.subr.mxu0 0.0
    %1209 = vmatpush1.msra.mxu0 %v1182
    %1210 = vmatprep.subr.mxu0 0.0
    %1211 = vmatpush1.msra.mxu0 %v1183
    %1212 = vmatprep.subr.mxu0 0.0
    %1213 = vmatpush1.msra.mxu0 0.0
    %1214 = vmatprep.subr.mxu0 0.0
    %1215 = vmatpush1.msra.mxu0 0.0
    %1216 = vmatprep.subr.mxu0 0.0
    %1217 = vmatpush1.msra.mxu0 0.0
    %1218 = vmatprep.subr.mxu0 0.0
    %1219 = vmatpush1.msra.mxu0 0.0
    %1220 = vmatprep.subr.mxu0 0.0
    %1221 = vmatpush1.msra.mxu0 0.0
    %1222 = vmatprep.subr.mxu0 0.0
    %1223 = vmatpush1.msra.mxu0 0.0
    %1224 = vmatprep.subr.mxu0 0.0
    %1225 = vmatpush1.msra.mxu0 0.0
    %1226 = vmatprep.subr.mxu0 0.0
    %1227 = vmatpush1.msra.mxu0 0.0
    %1228 = vmatprep.subr.mxu0 0.0
    %1229 = vmatpush1.msra.mxu0 0.0
    %1230 = vmatprep.subr.mxu0 0.0
    %1231 = vmatpush1.msra.mxu0 0.0
    %1232 = vmatprep.subr.mxu0 0.0
    %1233 = vmatpush1.msra.mxu0 0.0
    %1234 = vmatprep.subr.mxu0 0.0
    %1235 = vmatpush1.msra.mxu0 0.0
    %1236 = vmatprep.subr.mxu0 0.0
    %1237 = vmatpush1.msra.mxu0 0.0
    %1238 = vmatprep.subr.mxu0 0.0
    %1239 = vmatpush1.msra.mxu0 0.0
    %1240 = vmatprep.subr.mxu0 0.0
    %1241 = vmatpush1.msra.mxu0 0.0
    %1242 = vmatprep.subr.mxu0 0.0
    %1243 = vmatpush1.msra.mxu0 0.0
    %1244 = vmatprep.subr.mxu0 0.0
    %1245 = vmatpush1.msra.mxu0 0.0
    %1246 = vmatprep.subr.mxu0 0.0
    %1247 = vmatpush1.msra.mxu0 0.0
    %1248 = vmatprep.subr.mxu0 0.0
    %1249 = vmatpush1.msra.mxu0 0.0
    %1250 = vmatprep.subr.mxu0 0.0
    %1251 = vmatpush1.msra.mxu0 0.0
    %1252 = vmatprep.subr.mxu0 0.0
    %1253 = vmatpush1.msra.mxu0 0.0
    %1254 = vmatprep.subr.mxu0 0.0
    %1255 = vmatpush1.msra.mxu0 0.0
    %1256 = vmatprep.subr.mxu0 0.0
    %1257 = vmatpush1.msra.mxu0 0.0
    %1258 = vmatprep.subr.mxu0 0.0
    %1259 = vmatpush1.msra.mxu0 0.0
    %1260 = vmatprep.subr.mxu0 0.0
    %1261 = vmatpush1.msra.mxu0 0.0
    %1262 = vmatprep.subr.mxu0 0.0
    %1263 = vmatpush1.msra.mxu0 0.0
    %1264 = vmatprep.subr.mxu0 0.0
    %1265 = vmatpush1.msra.mxu0 0.0
    %1266 = vmatprep.subr.mxu0 0.0
    %1267 = vmatpush1.msra.mxu0 0.0
    %1268 = vmatprep.mubr.f32.mxu0 0.0
    %1269 = vmatmul.mubr.f32.gmra.mrb[0].mxu0 %v1193
    %v1270 = vpop.f32.mrb[0].mxu0
    %v1271 = vadd.f32 0.0, %v1270
    %v1272 = vpop.f32.mrb[0].mxu0
    %1273 = vmatprep.mubr.f32.mxu0 0.0
    %1274 = vmatmul.mubr.f32.gmra.mrb[0].mxu0 %v1196
    %v1275 = vpop.f32.mrb[0].mxu0
    %v1276 = vadd.f32 0.0, %v1275
    %v1277 = vpop.f32.mrb[0].mxu0
    %1278 = vmatprep.mubr.f32.mxu0 0.0
    %1279 = vmatmul.mubr.f32.gmra.mrb[0].mxu0 %v1199
    %v1280 = vpop.f32.mrb[0].mxu0
    %v1281 = vadd.f32 0.0, %v1280
    %v1282 = vpop.f32.mrb[0].mxu0
    %1283 = vmatprep.mubr.f32.mxu0 0.0
    %1284 = vmatmul.mubr.f32.gmra.mrb[0].mxu0 %v1202
    %v1285 = vpop.f32.mrb[0].mxu0
    %v1286 = vadd.f32 0.0, %v1285
    %v1287 = vpop.f32.mrb[0].mxu0
    %1288 = vdwg.mxu0
    %1290 = vset.pattern.permute.xlu0 0
    %1291 = vperm.xlu0 %1290, %v1184
    %v1292 = vpop.permute.xlu0 %1291
    %1295 = vset.pattern.permute.xlu0 0
    %1296 = vperm.xlu0 %1295, %v1185
    %v1297 = vpop.permute.xlu0 %1296
    %1300 = vset.pattern.permute.xlu0 0
    %1301 = vperm.xlu0 %1300, %v1186
    %v1302 = vpop.permute.xlu0 %1301
    %1305 = vset.pattern.permute.xlu0 0
    %1306 = vperm.xlu0 %1305, %v1187
    %v1307 = vpop.permute.xlu0 %1306
    %v1309 = vadd.f32 %v1292, %v1271
    %v1310 = vadd.f32 %v1297, %v1276
    %v1311 = vadd.f32 %v1302, %v1281
    %v1312 = vadd.f32 %v1307, %v1286
    %s1313 = scalar_lea.vmem %s7, 32
    %v1314 = vld [vmem:[%s1313] sm:$0xff]
    %v1315 = vld [vmem:[%s1313 + $0x8] sm:$0xff]
    %v1316 = vld [vmem:[%s1313 + $0x10] sm:$0xff]
    %v1317 = vld [vmem:[%s1313 + $0x18] sm:$0xff]
    %1322 = vrot.lane.b32.xlu0 %v1180, 127
    %v1323 = vpop.permute.xlu0 %1322
    %1324 = vrot.lane.b32.xlu0 %v1181, 127
    %v1325 = vpop.permute.xlu0 %1324
    %1326 = vrot.lane.b32.xlu0 %v1182, 127
    %v1327 = vpop.permute.xlu0 %1326
    %1328 = vrot.lane.b32.xlu0 %v1183, 127
    %v1329 = vpop.permute.xlu0 %1328
    %v1335 = vsel %vm247, %v1314, 0
    %v1338 = vsel %vm247, %v1315, 0
    %v1341 = vsel %vm247, %v1316, 0
    %v1344 = vsel %vm247, %v1317, 0
    %1346 = vmatprep.subr.mxu0 0.0
    %1347 = vmatpush1.msra.mxu0 %v1323
    %1348 = vmatprep.subr.mxu0 0.0
    %1349 = vmatpush1.msra.mxu0 %v1325
    %1350 = vmatprep.subr.mxu0 0.0
    %1351 = vmatpush1.msra.mxu0 %v1327
    %1352 = vmatprep.subr.mxu0 0.0
    %1353 = vmatpush1.msra.mxu0 %v1329
    %1354 = vmatprep.subr.mxu0 0.0
    %1355 = vmatpush1.msra.mxu0 0.0
    %1356 = vmatprep.subr.mxu0 0.0
    %1357 = vmatpush1.msra.mxu0 0.0
    %1358 = vmatprep.subr.mxu0 0.0
    %1359 = vmatpush1.msra.mxu0 0.0
    %1360 = vmatprep.subr.mxu0 0.0
    %1361 = vmatpush1.msra.mxu0 0.0
    %1362 = vmatprep.subr.mxu0 0.0
    %1363 = vmatpush1.msra.mxu0 0.0
    %1364 = vmatprep.subr.mxu0 0.0
    %1365 = vmatpush1.msra.mxu0 0.0
    %1366 = vmatprep.subr.mxu0 0.0
    %1367 = vmatpush1.msra.mxu0 0.0
    %1368 = vmatprep.subr.mxu0 0.0
    %1369 = vmatpush1.msra.mxu0 0.0
    %1370 = vmatprep.subr.mxu0 0.0
    %1371 = vmatpush1.msra.mxu0 0.0
    %1372 = vmatprep.subr.mxu0 0.0
    %1373 = vmatpush1.msra.mxu0 0.0
    %1374 = vmatprep.subr.mxu0 0.0
    %1375 = vmatpush1.msra.mxu0 0.0
    %1376 = vmatprep.subr.mxu0 0.0
    %1377 = vmatpush1.msra.mxu0 0.0
    %1378 = vmatprep.subr.mxu0 0.0
    %1379 = vmatpush1.msra.mxu0 0.0
    %1380 = vmatprep.subr.mxu0 0.0
    %1381 = vmatpush1.msra.mxu0 0.0
    %1382 = vmatprep.subr.mxu0 0.0
    %1383 = vmatpush1.msra.mxu0 0.0
    %1384 = vmatprep.subr.mxu0 0.0
    %1385 = vmatpush1.msra.mxu0 0.0
    %1386 = vmatprep.subr.mxu0 0.0
    %1387 = vmatpush1.msra.mxu0 0.0
    %1388 = vmatprep.subr.mxu0 0.0
    %1389 = vmatpush1.msra.mxu0 0.0
    %1390 = vmatprep.subr.mxu0 0.0
    %1391 = vmatpush1.msra.mxu0 0.0
    %1392 = vmatprep.subr.mxu0 0.0
    %1393 = vmatpush1.msra.mxu0 0.0
    %1394 = vmatprep.subr.mxu0 0.0
    %1395 = vmatpush1.msra.mxu0 0.0
    %1396 = vmatprep.subr.mxu0 0.0
    %1397 = vmatpush1.msra.mxu0 0.0
    %1398 = vmatprep.subr.mxu0 0.0
    %1399 = vmatpush1.msra.mxu0 0.0
    %1400 = vmatprep.subr.mxu0 0.0
    %1401 = vmatpush1.msra.mxu0 0.0
    %1402 = vmatprep.subr.mxu0 0.0
    %1403 = vmatpush1.msra.mxu0 0.0
    %1404 = vmatprep.subr.mxu0 0.0
    %1405 = vmatpush1.msra.mxu0 0.0
    %1406 = vmatprep.subr.mxu0 0.0
    %1407 = vmatpush1.msra.mxu0 0.0
    %1408 = vmatprep.subr.mxu0 0.0
    %1409 = vmatpush1.msra.mxu0 0.0
    %1410 = vmatprep.mubr.f32.mxu0 0.0
    %1411 = vmatmul.mubr.f32.gmra.mrb[0].mxu0 %v1335
    %v1412 = vpop.f32.mrb[0].mxu0
    %v1413 = vadd.f32 0.0, %v1412
    %v1414 = vpop.f32.mrb[0].mxu0
    %1415 = vmatprep.mubr.f32.mxu0 0.0
    %1416 = vmatmul.mubr.f32.gmra.mrb[0].mxu0 %v1338
    %v1417 = vpop.f32.mrb[0].mxu0
    %v1418 = vadd.f32 0.0, %v1417
    %v1419 = vpop.f32.mrb[0].mxu0
    %1420 = vmatprep.mubr.f32.mxu0 0.0
    %1421 = vmatmul.mubr.f32.gmra.mrb[0].mxu0 %v1341
    %v1422 = vpop.f32.mrb[0].mxu0
    %v1423 = vadd.f32 0.0, %v1422
    %v1424 = vpop.f32.mrb[0].mxu0
    %1425 = vmatprep.mubr.f32.mxu0 0.0
    %1426 = vmatmul.mubr.f32.gmra.mrb[0].mxu0 %v1344
    %v1427 = vpop.f32.mrb[0].mxu0
    %v1428 = vadd.f32 0.0, %v1427
    %v1429 = vpop.f32.mrb[0].mxu0
    %1430 = vdwg.mxu0
    %v1431 = vadd.f32 %v1309, %v1413
    %v1432 = vadd.f32 %v1310, %v1418
    %v1433 = vadd.f32 %v1311, %v1423
    %v1434 = vadd.f32 %v1312, %v1428
    %s1435 = scalar_lea.vmem %s7, 64
    %v1436 = vld [vmem:[%s1435] sm:$0xff]
    %v1437 = vld [vmem:[%s1435 + $0x8] sm:$0xff]
    %v1438 = vld [vmem:[%s1435 + $0x10] sm:$0xff]
    %v1439 = vld [vmem:[%s1435 + $0x18] sm:$0xff]
    %1440 = vrot.lane.b32.xlu0 %v1180, 126
    %v1441 = vpop.permute.xlu0 %1440
    %1442 = vrot.lane.b32.xlu0 %v1181, 126
    %v1443 = vpop.permute.xlu0 %1442
    %1444 = vrot.lane.b32.xlu0 %v1182, 126
    %v1445 = vpop.permute.xlu0 %1444
    %1446 = vrot.lane.b32.xlu0 %v1183, 126
    %v1447 = vpop.permute.xlu0 %1446
    %v1453 = vsel %vm247, %v1436, 0
    %v1456 = vsel %vm247, %v1437, 0
    %v1459 = vsel %vm247, %v1438, 0
    %v1462 = vsel %vm247, %v1439, 0
    %1464 = vmatprep.subr.mxu0 0.0
    %1465 = vmatpush1.msra.mxu0 %v1441
    %1466 = vmatprep.subr.mxu0 0.0
    %1467 = vmatpush1.msra.mxu0 %v1443
    %1468 = vmatprep.subr.mxu0 0.0
    %1469 = vmatpush1.msra.mxu0 %v1445
    %1470 = vmatprep.subr.mxu0 0.0
    %1471 = vmatpush1.msra.mxu0 %v1447
    %1472 = vmatprep.subr.mxu0 0.0
    %1473 = vmatpush1.msra.mxu0 0.0
    %1474 = vmatprep.subr.mxu0 0.0
    %1475 = vmatpush1.msra.mxu0 0.0
    %1476 = vmatprep.subr.mxu0 0.0
    %1477 = vmatpush1.msra.mxu0 0.0
    %1478 = vmatprep.subr.mxu0 0.0
    %1479 = vmatpush1.msra.mxu0 0.0
    %1480 = vmatprep.subr.mxu0 0.0
    %1481 = vmatpush1.msra.mxu0 0.0
    %1482 = vmatprep.subr.mxu0 0.0
    %1483 = vmatpush1.msra.mxu0 0.0
    %1484 = vmatprep.subr.mxu0 0.0
    %1485 = vmatpush1.msra.mxu0 0.0
    %1486 = vmatprep.subr.mxu0 0.0
    %1487 = vmatpush1.msra.mxu0 0.0
    %1488 = vmatprep.subr.mxu0 0.0
    %1489 = vmatpush1.msra.mxu0 0.0
    %1490 = vmatprep.subr.mxu0 0.0
    %1491 = vmatpush1.msra.mxu0 0.0
    %1492 = vmatprep.subr.mxu0 0.0
    %1493 = vmatpush1.msra.mxu0 0.0
    %1494 = vmatprep.subr.mxu0 0.0
    %1495 = vmatpush1.msra.mxu0 0.0
    %1496 = vmatprep.subr.mxu0 0.0
    %1497 = vmatpush1.msra.mxu0 0.0
    %1498 = vmatprep.subr.mxu0 0.0
    %1499 = vmatpush1.msra.mxu0 0.0
    %1500 = vmatprep.subr.mxu0 0.0
    %1501 = vmatpush1.msra.mxu0 0.0
    %1502 = vmatprep.subr.mxu0 0.0
    %1503 = vmatpush1.msra.mxu0 0.0
    %1504 = vmatprep.subr.mxu0 0.0
    %1505 = vmatpush1.msra.mxu0 0.0
    %1506 = vmatprep.subr.mxu0 0.0
    %1507 = vmatpush1.msra.mxu0 0.0
    %1508 = vmatprep.subr.mxu0 0.0
    %1509 = vmatpush1.msra.mxu0 0.0
    %1510 = vmatprep.subr.mxu0 0.0
    %1511 = vmatpush1.msra.mxu0 0.0
    %1512 = vmatprep.subr.mxu0 0.0
    %1513 = vmatpush1.msra.mxu0 0.0
    %1514 = vmatprep.subr.mxu0 0.0
    %1515 = vmatpush1.msra.mxu0 0.0
    %1516 = vmatprep.subr.mxu0 0.0
    %1517 = vmatpush1.msra.mxu0 0.0
    %1518 = vmatprep.subr.mxu0 0.0
    %1519 = vmatpush1.msra.mxu0 0.0
    %1520 = vmatprep.subr.mxu0 0.0
    %1521 = vmatpush1.msra.mxu0 0.0
    %1522 = vmatprep.subr.mxu0 0.0
    %1523 = vmatpush1.msra.mxu0 0.0
    %1524 = vmatprep.subr.mxu0 0.0
    %1525 = vmatpush1.msra.mxu0 0.0
    %1526 = vmatprep.subr.mxu0 0.0
    %1527 = vmatpush1.msra.mxu0 0.0
    %1528 = vmatprep.mubr.f32.mxu0 0.0
    %1529 = vmatmul.mubr.f32.gmra.mrb[0].mxu0 %v1453
    %v1530 = vpop.f32.mrb[0].mxu0
    %v1531 = vadd.f32 0.0, %v1530
    %v1532 = vpop.f32.mrb[0].mxu0
    %1533 = vmatprep.mubr.f32.mxu0 0.0
    %1534 = vmatmul.mubr.f32.gmra.mrb[0].mxu0 %v1456
    %v1535 = vpop.f32.mrb[0].mxu0
    %v1536 = vadd.f32 0.0, %v1535
    %v1537 = vpop.f32.mrb[0].mxu0
    %1538 = vmatprep.mubr.f32.mxu0 0.0
    %1539 = vmatmul.mubr.f32.gmra.mrb[0].mxu0 %v1459
    %v1540 = vpop.f32.mrb[0].mxu0
    %v1541 = vadd.f32 0.0, %v1540
    %v1542 = vpop.f32.mrb[0].mxu0
    %1543 = vmatprep.mubr.f32.mxu0 0.0
    %1544 = vmatmul.mubr.f32.gmra.mrb[0].mxu0 %v1462
    %v1545 = vpop.f32.mrb[0].mxu0
    %v1546 = vadd.f32 0.0, %v1545
    %v1547 = vpop.f32.mrb[0].mxu0
    %1548 = vdwg.mxu0
    %v1549 = vadd.f32 %v1431, %v1531
    %v1550 = vadd.f32 %v1432, %v1536
    %v1551 = vadd.f32 %v1433, %v1541
    %v1552 = vadd.f32 %v1434, %v1546
    %s1553 = scalar_lea.vmem %s7, 96
    %v1554 = vld [vmem:[%s1553] sm:$0xff]
    %v1555 = vld [vmem:[%s1553 + $0x8] sm:$0xff]
    %v1556 = vld [vmem:[%s1553 + $0x10] sm:$0xff]
    %v1557 = vld [vmem:[%s1553 + $0x18] sm:$0xff]
    %1558 = vrot.lane.b32.xlu0 %v1180, 125
    %v1559 = vpop.permute.xlu0 %1558
    %1560 = vrot.lane.b32.xlu0 %v1181, 125
    %v1561 = vpop.permute.xlu0 %1560
    %1562 = vrot.lane.b32.xlu0 %v1182, 125
    %v1563 = vpop.permute.xlu0 %1562
    %1564 = vrot.lane.b32.xlu0 %v1183, 125
    %v1565 = vpop.permute.xlu0 %1564
    %v1571 = vsel %vm247, %v1554, 0
    %v1574 = vsel %vm247, %v1555, 0
    %v1577 = vsel %vm247, %v1556, 0
    %v1580 = vsel %vm247, %v1557, 0
    %1582 = vmatprep.subr.mxu0 0.0
    %1583 = vmatpush1.msra.mxu0 %v1559
    %1584 = vmatprep.subr.mxu0 0.0
    %1585 = vmatpush1.msra.mxu0 %v1561
    %1586 = vmatprep.subr.mxu0 0.0
    %1587 = vmatpush1.msra.mxu0 %v1563
    %1588 = vmatprep.subr.mxu0 0.0
    %1589 = vmatpush1.msra.mxu0 %v1565
    %1590 = vmatprep.subr.mxu0 0.0
    %1591 = vmatpush1.msra.mxu0 0.0
    %1592 = vmatprep.subr.mxu0 0.0
    %1593 = vmatpush1.msra.mxu0 0.0
    %1594 = vmatprep.subr.mxu0 0.0
    %1595 = vmatpush1.msra.mxu0 0.0
    %1596 = vmatprep.subr.mxu0 0.0
    %1597 = vmatpush1.msra.mxu0 0.0
    %1598 = vmatprep.subr.mxu0 0.0
    %1599 = vmatpush1.msra.mxu0 0.0
    %1600 = vmatprep.subr.mxu0 0.0
    %1601 = vmatpush1.msra.mxu0 0.0
    %1602 = vmatprep.subr.mxu0 0.0
    %1603 = vmatpush1.msra.mxu0 0.0
    %1604 = vmatprep.subr.mxu0 0.0
    %1605 = vmatpush1.msra.mxu0 0.0
    %1606 = vmatprep.subr.mxu0 0.0
    %1607 = vmatpush1.msra.mxu0 0.0
    %1608 = vmatprep.subr.mxu0 0.0
    %1609 = vmatpush1.msra.mxu0 0.0
    %1610 = vmatprep.subr.mxu0 0.0
    %1611 = vmatpush1.msra.mxu0 0.0
    %1612 = vmatprep.subr.mxu0 0.0
    %1613 = vmatpush1.msra.mxu0 0.0
    %1614 = vmatprep.subr.mxu0 0.0
    %1615 = vmatpush1.msra.mxu0 0.0
    %1616 = vmatprep.subr.mxu0 0.0
    %1617 = vmatpush1.msra.mxu0 0.0
    %1618 = vmatprep.subr.mxu0 0.0
    %1619 = vmatpush1.msra.mxu0 0.0
    %1620 = vmatprep.subr.mxu0 0.0
    %1621 = vmatpush1.msra.mxu0 0.0
    %1622 = vmatprep.subr.mxu0 0.0
    %1623 = vmatpush1.msra.mxu0 0.0
    %1624 = vmatprep.subr.mxu0 0.0
    %1625 = vmatpush1.msra.mxu0 0.0
    %1626 = vmatprep.subr.mxu0 0.0
    %1627 = vmatpush1.msra.mxu0 0.0
    %1628 = vmatprep.subr.mxu0 0.0
    %1629 = vmatpush1.msra.mxu0 0.0
    %1630 = vmatprep.subr.mxu0 0.0
    %1631 = vmatpush1.msra.mxu0 0.0
    %1632 = vmatprep.subr.mxu0 0.0
    %1633 = vmatpush1.msra.mxu0 0.0
    %1634 = vmatprep.subr.mxu0 0.0
    %1635 = vmatpush1.msra.mxu0 0.0
    %1636 = vmatprep.subr.mxu0 0.0
    %1637 = vmatpush1.msra.mxu0 0.0
    %1638 = vmatprep.subr.mxu0 0.0
    %1639 = vmatpush1.msra.mxu0 0.0
    %1640 = vmatprep.subr.mxu0 0.0
    %1641 = vmatpush1.msra.mxu0 0.0
    %1642 = vmatprep.subr.mxu0 0.0
    %1643 = vmatpush1.msra.mxu0 0.0
    %1644 = vmatprep.subr.mxu0 0.0
    %1645 = vmatpush1.msra.mxu0 0.0
    %1646 = vmatprep.mubr.f32.mxu0 0.0
    %1647 = vmatmul.mubr.f32.gmra.mrb[0].mxu0 %v1571
    %v1648 = vpop.f32.mrb[0].mxu0
    %v1649 = vadd.f32 0.0, %v1648
    %v1650 = vpop.f32.mrb[0].mxu0
    %1651 = vmatprep.mubr.f32.mxu0 0.0
    %1652 = vmatmul.mubr.f32.gmra.mrb[0].mxu0 %v1574
    %v1653 = vpop.f32.mrb[0].mxu0
    %v1654 = vadd.f32 0.0, %v1653
    %v1655 = vpop.f32.mrb[0].mxu0
    %1656 = vmatprep.mubr.f32.mxu0 0.0
    %1657 = vmatmul.mubr.f32.gmra.mrb[0].mxu0 %v1577
    %v1658 = vpop.f32.mrb[0].mxu0
    %v1659 = vadd.f32 0.0, %v1658
    %v1660 = vpop.f32.mrb[0].mxu0
    %1661 = vmatprep.mubr.f32.mxu0 0.0
    %1662 = vmatmul.mubr.f32.gmra.mrb[0].mxu0 %v1580
    %v1663 = vpop.f32.mrb[0].mxu0
    %v1664 = vadd.f32 0.0, %v1663
    %v1665 = vpop.f32.mrb[0].mxu0
    %1666 = vdwg.mxu0
    %v1667 = vadd.f32 %v1549, %v1649
    %v1668 = vadd.f32 %v1550, %v1654
    %v1669 = vadd.f32 %v1551, %v1659
    %v1670 = vadd.f32 %v1552, %v1664
    %s1671 = scalar_lea.vmem %s7, 128
    %v1672 = vld [vmem:[%s1671] sm:$0xff]
    %v1673 = vld [vmem:[%s1671 + $0x8] sm:$0xff]
    %v1674 = vld [vmem:[%s1671 + $0x10] sm:$0xff]
    %v1675 = vld [vmem:[%s1671 + $0x18] sm:$0xff]
    %1676 = vrot.lane.b32.xlu0 %v1180, 124
    %v1677 = vpop.permute.xlu0 %1676
    %1678 = vrot.lane.b32.xlu0 %v1181, 124
    %v1679 = vpop.permute.xlu0 %1678
    %1680 = vrot.lane.b32.xlu0 %v1182, 124
    %v1681 = vpop.permute.xlu0 %1680
    %1682 = vrot.lane.b32.xlu0 %v1183, 124
    %v1683 = vpop.permute.xlu0 %1682
    %v1689 = vsel %vm247, %v1672, 0
    %v1692 = vsel %vm247, %v1673, 0
    %v1695 = vsel %vm247, %v1674, 0
    %v1698 = vsel %vm247, %v1675, 0
    %1700 = vmatprep.subr.mxu0 0.0
    %1701 = vmatpush1.msra.mxu0 %v1677
    %1702 = vmatprep.subr.mxu0 0.0
    %1703 = vmatpush1.msra.mxu0 %v1679
    %1704 = vmatprep.subr.mxu0 0.0
    %1705 = vmatpush1.msra.mxu0 %v1681
    %1706 = vmatprep.subr.mxu0 0.0
    %1707 = vmatpush1.msra.mxu0 %v1683
    %1708 = vmatprep.subr.mxu0 0.0
    %1709 = vmatpush1.msra.mxu0 0.0
    %1710 = vmatprep.subr.mxu0 0.0
    %1711 = vmatpush1.msra.mxu0 0.0
    %1712 = vmatprep.subr.mxu0 0.0
    %1713 = vmatpush1.msra.mxu0 0.0
    %1714 = vmatprep.subr.mxu0 0.0
    %1715 = vmatpush1.msra.mxu0 0.0
    %1716 = vmatprep.subr.mxu0 0.0
    %1717 = vmatpush1.msra.mxu0 0.0
    %1718 = vmatprep.subr.mxu0 0.0
    %1719 = vmatpush1.msra.mxu0 0.0
    %1720 = vmatprep.subr.mxu0 0.0
    %1721 = vmatpush1.msra.mxu0 0.0
    %1722 = vmatprep.subr.mxu0 0.0
    %1723 = vmatpush1.msra.mxu0 0.0
    %1724 = vmatprep.subr.mxu0 0.0
    %1725 = vmatpush1.msra.mxu0 0.0
    %1726 = vmatprep.subr.mxu0 0.0
    %1727 = vmatpush1.msra.mxu0 0.0
    %1728 = vmatprep.subr.mxu0 0.0
    %1729 = vmatpush1.msra.mxu0 0.0
    %1730 = vmatprep.subr.mxu0 0.0
    %1731 = vmatpush1.msra.mxu0 0.0
    %1732 = vmatprep.subr.mxu0 0.0
    %1733 = vmatpush1.msra.mxu0 0.0
    %1734 = vmatprep.subr.mxu0 0.0
    %1735 = vmatpush1.msra.mxu0 0.0
    %1736 = vmatprep.subr.mxu0 0.0
    %1737 = vmatpush1.msra.mxu0 0.0
    %1738 = vmatprep.subr.mxu0 0.0
    %1739 = vmatpush1.msra.mxu0 0.0
    %1740 = vmatprep.subr.mxu0 0.0
    %1741 = vmatpush1.msra.mxu0 0.0
    %1742 = vmatprep.subr.mxu0 0.0
    %1743 = vmatpush1.msra.mxu0 0.0
    %1744 = vmatprep.subr.mxu0 0.0
    %1745 = vmatpush1.msra.mxu0 0.0
    %1746 = vmatprep.subr.mxu0 0.0
    %1747 = vmatpush1.msra.mxu0 0.0
    %1748 = vmatprep.subr.mxu0 0.0
    %1749 = vmatpush1.msra.mxu0 0.0
    %1750 = vmatprep.subr.mxu0 0.0
    %1751 = vmatpush1.msra.mxu0 0.0
    %1752 = vmatprep.subr.mxu0 0.0
    %1753 = vmatpush1.msra.mxu0 0.0
    %1754 = vmatprep.subr.mxu0 0.0
    %1755 = vmatpush1.msra.mxu0 0.0
    %1756 = vmatprep.subr.mxu0 0.0
    %1757 = vmatpush1.msra.mxu0 0.0
    %1758 = vmatprep.subr.mxu0 0.0
    %1759 = vmatpush1.msra.mxu0 0.0
    %1760 = vmatprep.subr.mxu0 0.0
    %1761 = vmatpush1.msra.mxu0 0.0
    %1762 = vmatprep.subr.mxu0 0.0
    %1763 = vmatpush1.msra.mxu0 0.0
    %1764 = vmatprep.mubr.f32.mxu0 0.0
    %1765 = vmatmul.mubr.f32.gmra.mrb[0].mxu0 %v1689
    %v1766 = vpop.f32.mrb[0].mxu0
    %v1767 = vadd.f32 0.0, %v1766
    %v1768 = vpop.f32.mrb[0].mxu0
    %1769 = vmatprep.mubr.f32.mxu0 0.0
    %1770 = vmatmul.mubr.f32.gmra.mrb[0].mxu0 %v1692
    %v1771 = vpop.f32.mrb[0].mxu0
    %v1772 = vadd.f32 0.0, %v1771
    %v1773 = vpop.f32.mrb[0].mxu0
    %1774 = vmatprep.mubr.f32.mxu0 0.0
    %1775 = vmatmul.mubr.f32.gmra.mrb[0].mxu0 %v1695
    %v1776 = vpop.f32.mrb[0].mxu0
    %v1777 = vadd.f32 0.0, %v1776
    %v1778 = vpop.f32.mrb[0].mxu0
    %1779 = vmatprep.mubr.f32.mxu0 0.0
    %1780 = vmatmul.mubr.f32.gmra.mrb[0].mxu0 %v1698
    %v1781 = vpop.f32.mrb[0].mxu0
    %v1782 = vadd.f32 0.0, %v1781
    %v1783 = vpop.f32.mrb[0].mxu0
    %1784 = vdwg.mxu0
    %v1785 = vadd.f32 %v1667, %v1767
    %v1786 = vadd.f32 %v1668, %v1772
    %v1787 = vadd.f32 %v1669, %v1777
    %v1788 = vadd.f32 %v1670, %v1782
    %1790 = vset.pattern.permute.xlu0 0
    %1791 = vperm.xlu0 %1790, %v403
    %v1792 = vpop.permute.xlu0 %1791
    %1795 = vset.pattern.permute.xlu0 0
    %1796 = vperm.xlu0 %1795, %v408
    %v1797 = vpop.permute.xlu0 %1796
    %1800 = vset.pattern.permute.xlu0 0
    %1801 = vperm.xlu0 %1800, %v413
    %v1802 = vpop.permute.xlu0 %1801
    %1805 = vset.pattern.permute.xlu0 0
    %1806 = vperm.xlu0 %1805, %v418
    %v1807 = vpop.permute.xlu0 %1806
    %v1809 = vmul.f32 %v1792, %v1033
    %v1810 = vmul.f32 %v1797, %v1033
    %v1811 = vmul.f32 %v1802, %v1033
    %v1812 = vmul.f32 %v1807, %v1033
    %1814 = vset.pattern.permute.xlu0 0
    %1815 = vperm.xlu0 %1814, %v423
    %v1816 = vpop.permute.xlu0 %1815
    %1819 = vset.pattern.permute.xlu0 0
    %1820 = vperm.xlu0 %1819, %v428
    %v1821 = vpop.permute.xlu0 %1820
    %1824 = vset.pattern.permute.xlu0 0
    %1825 = vperm.xlu0 %1824, %v433
    %v1826 = vpop.permute.xlu0 %1825
    %1829 = vset.pattern.permute.xlu0 0
    %1830 = vperm.xlu0 %1829, %v438
    %v1831 = vpop.permute.xlu0 %1830
    %v1833 = vmul.f32 %v1816, %v1033
    %v1834 = vmul.f32 %v1821, %v1033
    %v1835 = vmul.f32 %v1826, %v1033
    %v1836 = vmul.f32 %v1831, %v1033
    %1837 = vset.pattern.permute.xlu0 1
    %1838 = vperm.xlu0 %1837, %v403
    %v1839 = vpop.permute.xlu0 %1838
    %1841 = vset.pattern.permute.xlu0 1
    %1842 = vperm.xlu0 %1841, %v408
    %v1843 = vpop.permute.xlu0 %1842
    %1845 = vset.pattern.permute.xlu0 1
    %1846 = vperm.xlu0 %1845, %v413
    %v1847 = vpop.permute.xlu0 %1846
    %1849 = vset.pattern.permute.xlu0 1
    %1850 = vperm.xlu0 %1849, %v418
    %v1851 = vpop.permute.xlu0 %1850
    %v1853 = vmul.f32 %v1839, %v1081
    %v1854 = vmul.f32 %v1843, %v1081
    %v1855 = vmul.f32 %v1847, %v1081
    %v1856 = vmul.f32 %v1851, %v1081
    %1857 = vset.pattern.permute.xlu0 1
    %1858 = vperm.xlu0 %1857, %v423
    %v1859 = vpop.permute.xlu0 %1858
    %1861 = vset.pattern.permute.xlu0 1
    %1862 = vperm.xlu0 %1861, %v428
    %v1863 = vpop.permute.xlu0 %1862
    %1865 = vset.pattern.permute.xlu0 1
    %1866 = vperm.xlu0 %1865, %v433
    %v1867 = vpop.permute.xlu0 %1866
    %1869 = vset.pattern.permute.xlu0 1
    %1870 = vperm.xlu0 %1869, %v438
    %v1871 = vpop.permute.xlu0 %1870
    %v1873 = vmul.f32 %v1859, %v1081
    %v1874 = vmul.f32 %v1863, %v1081
    %v1875 = vmul.f32 %v1867, %v1081
    %v1876 = vmul.f32 %v1871, %v1081
    %v1877 = vadd.f32 %v1809, %v1853
    %v1878 = vadd.f32 %v1810, %v1854
    %v1879 = vadd.f32 %v1811, %v1855
    %v1880 = vadd.f32 %v1812, %v1856
    %v1881 = vadd.f32 %v1833, %v1873
    %v1882 = vadd.f32 %v1834, %v1874
    %v1883 = vadd.f32 %v1835, %v1875
    %v1884 = vadd.f32 %v1836, %v1876
    %v1885 = vmax.f32 %v1785, 0.0
    %v1886 = vmax.f32 %v1786, 0.0
    %v1887 = vmax.f32 %v1787, 0.0
    %v1888 = vmax.f32 %v1788, 0.0
    %1893 = vrot.lane.b32.xlu0 %v1877, 126
    %v1894 = vpop.permute.xlu0 %1893
    %1895 = vrot.lane.b32.xlu0 %v1878, 126
    %v1896 = vpop.permute.xlu0 %1895
    %1897 = vrot.lane.b32.xlu0 %v1879, 126
    %v1898 = vpop.permute.xlu0 %1897
    %1899 = vrot.lane.b32.xlu0 %v1880, 126
    %v1900 = vpop.permute.xlu0 %1899
    %v1905 = vmul.f32 %v1885, %v1894
    %v1906 = vmul.f32 %v1886, %v1896
    %v1907 = vmul.f32 %v1887, %v1898
    %v1908 = vmul.f32 %v1888, %v1900
    %1913 = vrot.lane.b32.xlu0 %v1881, 126
    %v1914 = vpop.permute.xlu0 %1913
    %1915 = vrot.lane.b32.xlu0 %v1882, 126
    %v1916 = vpop.permute.xlu0 %1915
    %1917 = vrot.lane.b32.xlu0 %v1883, 126
    %v1918 = vpop.permute.xlu0 %1917
    %1919 = vrot.lane.b32.xlu0 %v1884, 126
    %v1920 = vpop.permute.xlu0 %1919
    %v1925 = vadd.f32 %v1905, %v1914
    %v1926 = vadd.f32 %v1906, %v1916
    %v1927 = vadd.f32 %v1907, %v1918
    %v1928 = vadd.f32 %v1908, %v1920
    %1933 = vrot.lane.b32.xlu0 %v1925, 2
    %v1934 = vpop.permute.xlu0 %1933
    %1935 = vrot.lane.b32.xlu0 %v1926, 2
    %v1936 = vpop.permute.xlu0 %1935
    %1937 = vrot.lane.b32.xlu0 %v1927, 2
    %v1938 = vpop.permute.xlu0 %1937
    %1939 = vrot.lane.b32.xlu0 %v1928, 2
    %v1940 = vpop.permute.xlu0 %1939
    %v1945 = vsel %vm1174, 0.0, %v1934
    %v1946 = vsel %vm1174, 0.0, %v1936
    %v1947 = vsel %vm1174, 0.0, %v1938
    %v1948 = vsel %vm1174, 0.0, %v1940
    %v1949 = vsel %vm1179, %v1945, 0.0
    %v1950 = vsel %vm1179, %v1946, 0.0
    %v1951 = vsel %vm1179, %v1947, 0.0
    %v1952 = vsel %vm1179, %v1948, 0.0
    %v1953 = vld [vmem:[%s10] sm:$0xff]
    %v1954 = vld [vmem:[#allocation12] sm:$0xff]
    %v1956 = vsel %vm247, %v1954, 0
    %1958 = vmatprep.subr.mxu0 0.0
    %1959 = vmatpush1.msra.mxu0 %v1949
    %1960 = vmatprep.subr.mxu0 0.0
    %1961 = vmatpush1.msra.mxu0 %v1950
    %1962 = vmatprep.subr.mxu0 0.0
    %1963 = vmatpush1.msra.mxu0 %v1951
    %1964 = vmatprep.subr.mxu0 0.0
    %1965 = vmatpush1.msra.mxu0 %v1952
    %1966 = vmatprep.subr.mxu0 0.0
    %1967 = vmatpush1.msra.mxu0 0.0
    %1968 = vmatprep.subr.mxu0 0.0
    %1969 = vmatpush1.msra.mxu0 0.0
    %1970 = vmatprep.subr.mxu0 0.0
    %1971 = vmatpush1.msra.mxu0 0.0
    %1972 = vmatprep.subr.mxu0 0.0
    %1973 = vmatpush1.msra.mxu0 0.0
    %1974 = vmatprep.subr.mxu0 0.0
    %1975 = vmatpush1.msra.mxu0 0.0
    %1976 = vmatprep.subr.mxu0 0.0
    %1977 = vmatpush1.msra.mxu0 0.0
    %1978 = vmatprep.subr.mxu0 0.0
    %1979 = vmatpush1.msra.mxu0 0.0
    %1980 = vmatprep.subr.mxu0 0.0
    %1981 = vmatpush1.msra.mxu0 0.0
    %1982 = vmatprep.subr.mxu0 0.0
    %1983 = vmatpush1.msra.mxu0 0.0
    %1984 = vmatprep.subr.mxu0 0.0
    %1985 = vmatpush1.msra.mxu0 0.0
    %1986 = vmatprep.subr.mxu0 0.0
    %1987 = vmatpush1.msra.mxu0 0.0
    %1988 = vmatprep.subr.mxu0 0.0
    %1989 = vmatpush1.msra.mxu0 0.0
    %1990 = vmatprep.subr.mxu0 0.0
    %1991 = vmatpush1.msra.mxu0 0.0
    %1992 = vmatprep.subr.mxu0 0.0
    %1993 = vmatpush1.msra.mxu0 0.0
    %1994 = vmatprep.subr.mxu0 0.0
    %1995 = vmatpush1.msra.mxu0 0.0
    %1996 = vmatprep.subr.mxu0 0.0
    %1997 = vmatpush1.msra.mxu0 0.0
    %1998 = vmatprep.subr.mxu0 0.0
    %1999 = vmatpush1.msra.mxu0 0.0
    %2000 = vmatprep.subr.mxu0 0.0
    %2001 = vmatpush1.msra.mxu0 0.0
    %2002 = vmatprep.subr.mxu0 0.0
    %2003 = vmatpush1.msra.mxu0 0.0
    %2004 = vmatprep.subr.mxu0 0.0
    %2005 = vmatpush1.msra.mxu0 0.0
    %2006 = vmatprep.subr.mxu0 0.0
    %2007 = vmatpush1.msra.mxu0 0.0
    %2008 = vmatprep.subr.mxu0 0.0
    %2009 = vmatpush1.msra.mxu0 0.0
    %2010 = vmatprep.subr.mxu0 0.0
    %2011 = vmatpush1.msra.mxu0 0.0
    %2012 = vmatprep.subr.mxu0 0.0
    %2013 = vmatpush1.msra.mxu0 0.0
    %2014 = vmatprep.subr.mxu0 0.0
    %2015 = vmatpush1.msra.mxu0 0.0
    %2016 = vmatprep.subr.mxu0 0.0
    %2017 = vmatpush1.msra.mxu0 0.0
    %2018 = vmatprep.subr.mxu0 0.0
    %2019 = vmatpush1.msra.mxu0 0.0
    %2020 = vmatprep.subr.mxu0 0.0
    %2021 = vmatpush1.msra.mxu0 0.0
    %2022 = vmatprep.mubr.f32.mxu0 0.0
    %2023 = vmatmul.mubr.f32.gmra.mrb[0].mxu0 %v1956
    %v2024 = vpop.f32.mrb[0].mxu0
    %v2025 = vadd.f32 0.0, %v2024
    %v2026 = vpop.f32.mrb[0].mxu0
    %2027 = vdwg.mxu0
    %2029 = vset.pattern.permute.xlu0 0
    %2030 = vperm.xlu0 %2029, %v1953
    %v2031 = vpop.permute.xlu0 %2030
    %v2033 = vadd.f32 %v2031, %v2025
    %s2034 = scalar_lea.vmem [#allocation12], 8
    %v2035 = vld [vmem:[%s2034] sm:$0xff]
    %2040 = vrot.lane.b32.xlu0 %v1949, 127
    %v2041 = vpop.permute.xlu0 %2040
    %2042 = vrot.lane.b32.xlu0 %v1950, 127
    %v2043 = vpop.permute.xlu0 %2042
    %2044 = vrot.lane.b32.xlu0 %v1951, 127
    %v2045 = vpop.permute.xlu0 %2044
    %2046 = vrot.lane.b32.xlu0 %v1952, 127
    %v2047 = vpop.permute.xlu0 %2046
    %v2053 = vsel %vm247, %v2035, 0
    %2055 = vmatprep.subr.mxu0 0.0
    %2056 = vmatpush1.msra.mxu0 %v2041
    %2057 = vmatprep.subr.mxu0 0.0
    %2058 = vmatpush1.msra.mxu0 %v2043
    %2059 = vmatprep.subr.mxu0 0.0
    %2060 = vmatpush1.msra.mxu0 %v2045
    %2061 = vmatprep.subr.mxu0 0.0
    %2062 = vmatpush1.msra.mxu0 %v2047
    %2063 = vmatprep.subr.mxu0 0.0
    %2064 = vmatpush1.msra.mxu0 0.0
    %2065 = vmatprep.subr.mxu0 0.0
    %2066 = vmatpush1.msra.mxu0 0.0
    %2067 = vmatprep.subr.mxu0 0.0
    %2068 = vmatpush1.msra.mxu0 0.0
    %2069 = vmatprep.subr.mxu0 0.0
    %2070 = vmatpush1.msra.mxu0 0.0
    %2071 = vmatprep.subr.mxu0 0.0
    %2072 = vmatpush1.msra.mxu0 0.0
    %2073 = vmatprep.subr.mxu0 0.0
    %2074 = vmatpush1.msra.mxu0 0.0
    %2075 = vmatprep.subr.mxu0 0.0
    %2076 = vmatpush1.msra.mxu0 0.0
    %2077 = vmatprep.subr.mxu0 0.0
    %2078 = vmatpush1.msra.mxu0 0.0
    %2079 = vmatprep.subr.mxu0 0.0
    %2080 = vmatpush1.msra.mxu0 0.0
    %2081 = vmatprep.subr.mxu0 0.0
    %2082 = vmatpush1.msra.mxu0 0.0
    %2083 = vmatprep.subr.mxu0 0.0
    %2084 = vmatpush1.msra.mxu0 0.0
    %2085 = vmatprep.subr.mxu0 0.0
    %2086 = vmatpush1.msra.mxu0 0.0
    %2087 = vmatprep.subr.mxu0 0.0
    %2088 = vmatpush1.msra.mxu0 0.0
    %2089 = vmatprep.subr.mxu0 0.0
    %2090 = vmatpush1.msra.mxu0 0.0
    %2091 = vmatprep.subr.mxu0 0.0
    %2092 = vmatpush1.msra.mxu0 0.0
    %2093 = vmatprep.subr.mxu0 0.0
    %2094 = vmatpush1.msra.mxu0 0.0
    %2095 = vmatprep.subr.mxu0 0.0
    %2096 = vmatpush1.msra.mxu0 0.0
    %2097 = vmatprep.subr.mxu0 0.0
    %2098 = vmatpush1.msra.mxu0 0.0
    %2099 = vmatprep.subr.mxu0 0.0
    %2100 = vmatpush1.msra.mxu0 0.0
    %2101 = vmatprep.subr.mxu0 0.0
    %2102 = vmatpush1.msra.mxu0 0.0
    %2103 = vmatprep.subr.mxu0 0.0
    %2104 = vmatpush1.msra.mxu0 0.0
    %2105 = vmatprep.subr.mxu0 0.0
    %2106 = vmatpush1.msra.mxu0 0.0
    %2107 = vmatprep.subr.mxu0 0.0
    %2108 = vmatpush1.msra.mxu0 0.0
    %2109 = vmatprep.subr.mxu0 0.0
    %2110 = vmatpush1.msra.mxu0 0.0
    %2111 = vmatprep.subr.mxu0 0.0
    %2112 = vmatpush1.msra.mxu0 0.0
    %2113 = vmatprep.subr.mxu0 0.0
    %2114 = vmatpush1.msra.mxu0 0.0
    %2115 = vmatprep.subr.mxu0 0.0
    %2116 = vmatpush1.msra.mxu0 0.0
    %2117 = vmatprep.subr.mxu0 0.0
    %2118 = vmatpush1.msra.mxu0 0.0
    %2119 = vmatprep.mubr.f32.mxu0 0.0
    %2120 = vmatmul.mubr.f32.gmra.mrb[0].mxu0 %v2053
    %v2121 = vpop.f32.mrb[0].mxu0
    %v2122 = vadd.f32 0.0, %v2121
    %v2123 = vpop.f32.mrb[0].mxu0
    %2124 = vdwg.mxu0
    %v2125 = vadd.f32 %v2033, %v2122
    %s2126 = scalar_lea.vmem [#allocation12], 16
    %v2127 = vld [vmem:[%s2126] sm:$0xff]
    %2128 = vrot.lane.b32.xlu0 %v1949, 126
    %v2129 = vpop.permute.xlu0 %2128
    %2130 = vrot.lane.b32.xlu0 %v1950, 126
    %v2131 = vpop.permute.xlu0 %2130
    %2132 = vrot.lane.b32.xlu0 %v1951, 126
    %v2133 = vpop.permute.xlu0 %2132
    %2134 = vrot.lane.b32.xlu0 %v1952, 126
    %v2135 = vpop.permute.xlu0 %2134
    %v2141 = vsel %vm247, %v2127, 0
    %2143 = vmatprep.subr.mxu0 0.0
    %2144 = vmatpush1.msra.mxu0 %v2129
    %2145 = vmatprep.subr.mxu0 0.0
    %2146 = vmatpush1.msra.mxu0 %v2131
    %2147 = vmatprep.subr.mxu0 0.0
    %2148 = vmatpush1.msra.mxu0 %v2133
    %2149 = vmatprep.subr.mxu0 0.0
    %2150 = vmatpush1.msra.mxu0 %v2135
    %2151 = vmatprep.subr.mxu0 0.0
    %2152 = vmatpush1.msra.mxu0 0.0
    %2153 = vmatprep.subr.mxu0 0.0
    %2154 = vmatpush1.msra.mxu0 0.0
    %2155 = vmatprep.subr.mxu0 0.0
    %2156 = vmatpush1.msra.mxu0 0.0
    %2157 = vmatprep.subr.mxu0 0.0
    %2158 = vmatpush1.msra.mxu0 0.0
    %2159 = vmatprep.subr.mxu0 0.0
    %2160 = vmatpush1.msra.mxu0 0.0
    %2161 = vmatprep.subr.mxu0 0.0
    %2162 = vmatpush1.msra.mxu0 0.0
    %2163 = vmatprep.subr.mxu0 0.0
    %2164 = vmatpush1.msra.mxu0 0.0
    %2165 = vmatprep.subr.mxu0 0.0
    %2166 = vmatpush1.msra.mxu0 0.0
    %2167 = vmatprep.subr.mxu0 0.0
    %2168 = vmatpush1.msra.mxu0 0.0
    %2169 = vmatprep.subr.mxu0 0.0
    %2170 = vmatpush1.msra.mxu0 0.0
    %2171 = vmatprep.subr.mxu0 0.0
    %2172 = vmatpush1.msra.mxu0 0.0
    %2173 = vmatprep.subr.mxu0 0.0
    %2174 = vmatpush1.msra.mxu0 0.0
    %2175 = vmatprep.subr.mxu0 0.0
    %2176 = vmatpush1.msra.mxu0 0.0
    %2177 = vmatprep.subr.mxu0 0.0
    %2178 = vmatpush1.msra.mxu0 0.0
    %2179 = vmatprep.subr.mxu0 0.0
    %2180 = vmatpush1.msra.mxu0 0.0
    %2181 = vmatprep.subr.mxu0 0.0
    %2182 = vmatpush1.msra.mxu0 0.0
    %2183 = vmatprep.subr.mxu0 0.0
    %2184 = vmatpush1.msra.mxu0 0.0
    %2185 = vmatprep.subr.mxu0 0.0
    %2186 = vmatpush1.msra.mxu0 0.0
    %2187 = vmatprep.subr.mxu0 0.0
    %2188 = vmatpush1.msra.mxu0 0.0
    %2189 = vmatprep.subr.mxu0 0.0
    %2190 = vmatpush1.msra.mxu0 0.0
    %2191 = vmatprep.subr.mxu0 0.0
    %2192 = vmatpush1.msra.mxu0 0.0
    %2193 = vmatprep.subr.mxu0 0.0
    %2194 = vmatpush1.msra.mxu0 0.0
    %2195 = vmatprep.subr.mxu0 0.0
    %2196 = vmatpush1.msra.mxu0 0.0
    %2197 = vmatprep.subr.mxu0 0.0
    %2198 = vmatpush1.msra.mxu0 0.0
    %2199 = vmatprep.subr.mxu0 0.0
    %2200 = vmatpush1.msra.mxu0 0.0
    %2201 = vmatprep.subr.mxu0 0.0
    %2202 = vmatpush1.msra.mxu0 0.0
    %2203 = vmatprep.subr.mxu0 0.0
    %2204 = vmatpush1.msra.mxu0 0.0
    %2205 = vmatprep.subr.mxu0 0.0
    %2206 = vmatpush1.msra.mxu0 0.0
    %2207 = vmatprep.mubr.f32.mxu0 0.0
    %2208 = vmatmul.mubr.f32.gmra.mrb[0].mxu0 %v2141
    %v2209 = vpop.f32.mrb[0].mxu0
    %v2210 = vadd.f32 0.0, %v2209
    %v2211 = vpop.f32.mrb[0].mxu0
    %2212 = vdwg.mxu0
    %v2213 = vadd.f32 %v2125, %v2210
    %s2214 = scalar_lea.vmem [#allocation12], 24
    %v2215 = vld [vmem:[%s2214] sm:$0xff]
    %2216 = vrot.lane.b32.xlu0 %v1949, 125
    %v2217 = vpop.permute.xlu0 %2216
    %2218 = vrot.lane.b32.xlu0 %v1950, 125
    %v2219 = vpop.permute.xlu0 %2218
    %2220 = vrot.lane.b32.xlu0 %v1951, 125
    %v2221 = vpop.permute.xlu0 %2220
    %2222 = vrot.lane.b32.xlu0 %v1952, 125
    %v2223 = vpop.permute.xlu0 %2222
    %v2229 = vsel %vm247, %v2215, 0
    %2231 = vmatprep.subr.mxu0 0.0
    %2232 = vmatpush1.msra.mxu0 %v2217
    %2233 = vmatprep.subr.mxu0 0.0
    %2234 = vmatpush1.msra.mxu0 %v2219
    %2235 = vmatprep.subr.mxu0 0.0
    %2236 = vmatpush1.msra.mxu0 %v2221
    %2237 = vmatprep.subr.mxu0 0.0
    %2238 = vmatpush1.msra.mxu0 %v2223
    %2239 = vmatprep.subr.mxu0 0.0
    %2240 = vmatpush1.msra.mxu0 0.0
    %2241 = vmatprep.subr.mxu0 0.0
    %2242 = vmatpush1.msra.mxu0 0.0
    %2243 = vmatprep.subr.mxu0 0.0
    %2244 = vmatpush1.msra.mxu0 0.0
    %2245 = vmatprep.subr.mxu0 0.0
    %2246 = vmatpush1.msra.mxu0 0.0
    %2247 = vmatprep.subr.mxu0 0.0
    %2248 = vmatpush1.msra.mxu0 0.0
    %2249 = vmatprep.subr.mxu0 0.0
    %2250 = vmatpush1.msra.mxu0 0.0
    %2251 = vmatprep.subr.mxu0 0.0
    %2252 = vmatpush1.msra.mxu0 0.0
    %2253 = vmatprep.subr.mxu0 0.0
    %2254 = vmatpush1.msra.mxu0 0.0
    %2255 = vmatprep.subr.mxu0 0.0
    %2256 = vmatpush1.msra.mxu0 0.0
    %2257 = vmatprep.subr.mxu0 0.0
    %2258 = vmatpush1.msra.mxu0 0.0
    %2259 = vmatprep.subr.mxu0 0.0
    %2260 = vmatpush1.msra.mxu0 0.0
    %2261 = vmatprep.subr.mxu0 0.0
    %2262 = vmatpush1.msra.mxu0 0.0
    %2263 = vmatprep.subr.mxu0 0.0
    %2264 = vmatpush1.msra.mxu0 0.0
    %2265 = vmatprep.subr.mxu0 0.0
    %2266 = vmatpush1.msra.mxu0 0.0
    %2267 = vmatprep.subr.mxu0 0.0
    %2268 = vmatpush1.msra.mxu0 0.0
    %2269 = vmatprep.subr.mxu0 0.0
    %2270 = vmatpush1.msra.mxu0 0.0
    %2271 = vmatprep.subr.mxu0 0.0
    %2272 = vmatpush1.msra.mxu0 0.0
    %2273 = vmatprep.subr.mxu0 0.0
    %2274 = vmatpush1.msra.mxu0 0.0
    %2275 = vmatprep.subr.mxu0 0.0
    %2276 = vmatpush1.msra.mxu0 0.0
    %2277 = vmatprep.subr.mxu0 0.0
    %2278 = vmatpush1.msra.mxu0 0.0
    %2279 = vmatprep.subr.mxu0 0.0
    %2280 = vmatpush1.msra.mxu0 0.0
    %2281 = vmatprep.subr.mxu0 0.0
    %2282 = vmatpush1.msra.mxu0 0.0
    %2283 = vmatprep.subr.mxu0 0.0
    %2284 = vmatpush1.msra.mxu0 0.0
    %2285 = vmatprep.subr.mxu0 0.0
    %2286 = vmatpush1.msra.mxu0 0.0
    %2287 = vmatprep.subr.mxu0 0.0
    %2288 = vmatpush1.msra.mxu0 0.0
    %2289 = vmatprep.subr.mxu0 0.0
    %2290 = vmatpush1.msra.mxu0 0.0
    %2291 = vmatprep.subr.mxu0 0.0
    %2292 = vmatpush1.msra.mxu0 0.0
    %2293 = vmatprep.subr.mxu0 0.0
    %2294 = vmatpush1.msra.mxu0 0.0
    %2295 = vmatprep.mubr.f32.mxu0 0.0
    %2296 = vmatmul.mubr.f32.gmra.mrb[0].mxu0 %v2229
    %v2297 = vpop.f32.mrb[0].mxu0
    %v2298 = vadd.f32 0.0, %v2297
    %v2299 = vpop.f32.mrb[0].mxu0
    %2300 = vdwg.mxu0
    %v2301 = vadd.f32 %v2213, %v2298
    %s2302 = scalar_lea.vmem [#allocation12], 32
    %v2303 = vld [vmem:[%s2302] sm:$0xff]
    %2304 = vrot.lane.b32.xlu0 %v1949, 124
    %v2305 = vpop.permute.xlu0 %2304
    %2306 = vrot.lane.b32.xlu0 %v1950, 124
    %v2307 = vpop.permute.xlu0 %2306
    %2308 = vrot.lane.b32.xlu0 %v1951, 124
    %v2309 = vpop.permute.xlu0 %2308
    %2310 = vrot.lane.b32.xlu0 %v1952, 124
    %v2311 = vpop.permute.xlu0 %2310
    %v2317 = vsel %vm247, %v2303, 0
    %2319 = vmatprep.subr.mxu0 0.0
    %2320 = vmatpush1.msra.mxu0 %v2305
    %2321 = vmatprep.subr.mxu0 0.0
    %2322 = vmatpush1.msra.mxu0 %v2307
    %2323 = vmatprep.subr.mxu0 0.0
    %2324 = vmatpush1.msra.mxu0 %v2309
    %2325 = vmatprep.subr.mxu0 0.0
    %2326 = vmatpush1.msra.mxu0 %v2311
    %2327 = vmatprep.subr.mxu0 0.0
    %2328 = vmatpush1.msra.mxu0 0.0
    %2329 = vmatprep.subr.mxu0 0.0
    %2330 = vmatpush1.msra.mxu0 0.0
    %2331 = vmatprep.subr.mxu0 0.0
    %2332 = vmatpush1.msra.mxu0 0.0
    %2333 = vmatprep.subr.mxu0 0.0
    %2334 = vmatpush1.msra.mxu0 0.0
    %2335 = vmatprep.subr.mxu0 0.0
    %2336 = vmatpush1.msra.mxu0 0.0
    %2337 = vmatprep.subr.mxu0 0.0
    %2338 = vmatpush1.msra.mxu0 0.0
    %2339 = vmatprep.subr.mxu0 0.0
    %2340 = vmatpush1.msra.mxu0 0.0
    %2341 = vmatprep.subr.mxu0 0.0
    %2342 = vmatpush1.msra.mxu0 0.0
    %2343 = vmatprep.subr.mxu0 0.0
    %2344 = vmatpush1.msra.mxu0 0.0
    %2345 = vmatprep.subr.mxu0 0.0
    %2346 = vmatpush1.msra.mxu0 0.0
    %2347 = vmatprep.subr.mxu0 0.0
    %2348 = vmatpush1.msra.mxu0 0.0
    %2349 = vmatprep.subr.mxu0 0.0
    %2350 = vmatpush1.msra.mxu0 0.0
    %2351 = vmatprep.subr.mxu0 0.0
    %2352 = vmatpush1.msra.mxu0 0.0
    %2353 = vmatprep.subr.mxu0 0.0
    %2354 = vmatpush1.msra.mxu0 0.0
    %2355 = vmatprep.subr.mxu0 0.0
    %2356 = vmatpush1.msra.mxu0 0.0
    %2357 = vmatprep.subr.mxu0 0.0
    %2358 = vmatpush1.msra.mxu0 0.0
    %2359 = vmatprep.subr.mxu0 0.0
    %2360 = vmatpush1.msra.mxu0 0.0
    %2361 = vmatprep.subr.mxu0 0.0
    %2362 = vmatpush1.msra.mxu0 0.0
    %2363 = vmatprep.subr.mxu0 0.0
    %2364 = vmatpush1.msra.mxu0 0.0
    %2365 = vmatprep.subr.mxu0 0.0
    %2366 = vmatpush1.msra.mxu0 0.0
    %2367 = vmatprep.subr.mxu0 0.0
    %2368 = vmatpush1.msra.mxu0 0.0
    %2369 = vmatprep.subr.mxu0 0.0
    %2370 = vmatpush1.msra.mxu0 0.0
    %2371 = vmatprep.subr.mxu0 0.0
    %2372 = vmatpush1.msra.mxu0 0.0
    %2373 = vmatprep.subr.mxu0 0.0
    %2374 = vmatpush1.msra.mxu0 0.0
    %2375 = vmatprep.subr.mxu0 0.0
    %2376 = vmatpush1.msra.mxu0 0.0
    %2377 = vmatprep.subr.mxu0 0.0
    %2378 = vmatpush1.msra.mxu0 0.0
    %2379 = vmatprep.subr.mxu0 0.0
    %2380 = vmatpush1.msra.mxu0 0.0
    %2381 = vmatprep.subr.mxu0 0.0
    %2382 = vmatpush1.msra.mxu0 0.0
    %2383 = vmatprep.mubr.f32.mxu0 0.0
    %2384 = vmatmul.mubr.f32.gmra.mrb[0].mxu0 %v2317
    %v2385 = vpop.f32.mrb[0].mxu0
    %v2386 = vadd.f32 0.0, %v2385
    %v2387 = vpop.f32.mrb[0].mxu0
    %2388 = vdwg.mxu0
    %v2389 = vadd.f32 %v2301, %v2386
    %2391 = vrot.lane.b32.xlu0 %v2389, 2
    %v2392 = vpop.permute.xlu0 %2391
    %v2394 = vsel %vm1174, 0.0, %v2392
    %v2395 = vsel %vm1179, %v2394, 0.0
    %2396 = vst [vmem:[%s11] sm:$0xff] %v2395
    // Predicated region
    $region74: #{_forward_impl.1} parent=1 // pred_check
      _
    $region75: #{_forward_impl.1} parent=1 // pred_check_branch
      %2398 = sbr.rel (0) target = $region77
    $region76: #{_forward_impl.1} parent=1 // pred_region
      _
    $region77: #{_forward_impl.1} parent=1 // pred_fallthru
      _
    // Predicated region
    $region78: #{_forward_impl.1} parent=1 // pred_check
      _
    $region79: #{_forward_impl.1} parent=1 // pred_check_branch
      %2400 = sbr.rel (0) target = $region81
    $region80: #{_forward_impl.1} parent=1 // pred_region
      _
    $region81: #{_forward_impl.1} parent=1 // pred_fallthru
      _
    %2401 = vsyncpa [#allocation3], 1
    %2402 = vsyncpa [#allocation5], 1
    %2403 = vsyncpa [#allocation8], 1
    %2404 = vsyncpa [#allocation11], 1

</llo_original>
